<compile_context>
chip_gen: v6e
topology: v6e:2x2x1
jax: 0.10.0
libtpu: 0.0.40
codegen_flags: <defaults>
</compile_context>

<pallas_src>
import functools

import jax
import jax.numpy as jnp
from jax.experimental import pallas as pl
from jax.experimental.pallas import tpu as pltpu

NEG_SLOPE = 0.01  # torch.nn.LeakyReLU default negative_slope


def _leaky_relu(h):
    return jnp.where(h > 0, h, NEG_SLOPE * h)


def _round_up(a, b):
    return ((a + b - 1) // b) * b


def _vmem_limit_bytes(tile_n, dim, hidden, depth):
    """Explicit scoped-VMEM budget (with headroom), clamped to [4, 32] MiB."""
    f32 = 4
    # Double-buffered per-grid-step streams: x, packed (t,y), output.
    streams = 2 * tile_n * (dim + 2 + 2) * f32
    # Weights resident across the grid (upper bound, incl. stacked heads).
    w_elems = ((dim + 2) * hidden + depth * (hidden * hidden + hidden)
               + 2 * hidden * hidden + 2 * hidden + 2 * hidden + 2)
    weights = 2 * w_elems * f32
    # Working activations / temporaries in the kernel body.
    temps = 8 * tile_n * max(dim, 2 * hidden) * f32
    budget = 2 * (streams + weights + temps)
    return max(4 * 1024 * 1024, min(int(budget), 32 * 1024 * 1024))


def _gen_kernel(depth, binary_y, approx_sigmoid,
                x_ref, ty_ref, w0x_ref, w0ty_ref, b0_ref, *rest):
    # rest layout: depth * (W_hidden, b_hidden), Wheads1, bheads1, w2row, b2, o_ref
    hidden_refs = rest[: 2 * depth]
    wh1_ref = rest[2 * depth]        # (H, 2H)  both heads' hidden weights
    bh1_ref = rest[2 * depth + 1]    # (1, 2H)
    w2r_ref = rest[2 * depth + 2]    # (1, 2H)  both heads' output rows (f32)
    b2_ref = rest[2 * depth + 3]     # (1, 2)
    o_ref = rest[2 * depth + 4]      # (TILE_N, 2)

    x = x_ref[...]                   # (TILE_N, Dim)  f32
    ty = ty_ref[...]                 # (TILE_N, 2)    f32, columns = [t | y]
    w0x = w0x_ref[...]               # (Dim, H)       matmul dtype
    w0ty = w0ty_ref[...]             # (2, H)         f32
    H = w0x.shape[1]

    # First Linear(Dim+2, H): concat folded into matmul + two VPU rank-1 terms.
    h = jnp.dot(x.astype(w0x.dtype), w0x, preferred_element_type=jnp.float32)
    h = h + ty[:, 0:1] * w0ty[0:1, :] + ty[:, 1:2] * w0ty[1:2, :] + b0_ref[...]
    h = _leaky_relu(h)

    # depth x [Dropout, Linear(H, H), LeakyReLU]
    # TODO(synk): training-mode nn.Dropout (p=0.5 stochastic mask) not
    # implemented; eval-mode forward treats it as identity.
    for d in range(depth):
        w = hidden_refs[2 * d][...]
        b = hidden_refs[2 * d + 1][...]
        h = _leaky_relu(
            jnp.dot(h.astype(w.dtype), w, preferred_element_type=jnp.float32) + b)

    # Both heads' Linear(H, H) + LeakyReLU fused into one (H, 2H) matmul.
    wh1 = wh1_ref[...]
    hh = _leaky_relu(
        jnp.dot(h.astype(wh1.dtype), wh1, preferred_element_type=jnp.float32)
        + bh1_ref[...])                                    # (TILE_N, 2H)

    # Final Linear(H, 1) per head as VPU multiply + lane reduction (keeps the
    # MXU out of the width-1 path).
    prod = hh * w2r_ref[...]                               # (TILE_N, 2H) f32
    la = jnp.sum(prod[:, :H], axis=-1, keepdims=True)      # head 0 logit
    lb = jnp.sum(prod[:, H:], axis=-1, keepdims=True)      # head 1 logit
    lane = jax.lax.broadcasted_iota(jnp.int32, (x.shape[0], 2), 1)
    logits = jnp.where(lane == 0, la, lb) + b2_ref[...]    # (TILE_N, 2)

    if binary_y:
        out = pl.reciprocal(1.0 + jnp.exp(-logits), approx=approx_sigmoid)
    else:
        out = logits
    o_ref[...] = out.astype(o_ref.dtype)


def counterfactual_generator(x, t, y, params, depth, *, binary_y=True,
                             block_n=256, matmul_dtype=jnp.bfloat16):
    """params: dict with
         w0 (Dim+2, H), b0 (1, H),
         hidden = [(W_i (H, H), b_i (1, H)) for i in range(depth)],
         heads  = [(W1 (H, H), b1 (1, H), w2 (H, 1), b2 (1, 1)) for 2 heads]."""
    N, dim = x.shape
    H = params["b0"].shape[1]
    tile_n = min(block_n, _round_up(N, 8))
    grid = (pl.cdiv(N, tile_n),)

    # Pack the two narrow side inputs into a single (N, 2) stream.
    ty = jnp.concatenate([t.astype(jnp.float32), y.astype(jnp.float32)], axis=1)

    mm = matmul_dtype
    w0 = params["w0"]
    args = [x, ty,
            w0[:dim, :].astype(mm),   # (Dim, H)  MXU operand
            w0[dim:, :],              # (2, H)    f32 rows for the VPU blend
            params["b0"]]
    in_specs = [
        pl.BlockSpec((tile_n, dim), lambda i: (i, 0)),
        pl.BlockSpec((tile_n, 2), lambda i: (i, 0)),
        pl.BlockSpec((dim, H), lambda i: (0, 0)),
        pl.BlockSpec((2, H), lambda i: (0, 0)),
        pl.BlockSpec((1, H), lambda i: (0, 0)),
    ]
    for (w, b) in params["hidden"]:
        args += [w.astype(mm), b]
        in_specs += [pl.BlockSpec((H, H), lambda i: (0, 0)),
                     pl.BlockSpec((1, H), lambda i: (0, 0))]

    (wa1, ba1, wa2, ba2), (wb1, bb1, wb2, bb2) = params["heads"]
    wh1 = jnp.concatenate([wa1, wb1], axis=1).astype(mm)    # (H, 2H)
    bh1 = jnp.concatenate([ba1, bb1], axis=1)               # (1, 2H)
    w2r = jnp.concatenate([wa2.T, wb2.T], axis=1)           # (1, 2H) f32
    b2 = jnp.concatenate([ba2, bb2], axis=1)                # (1, 2)
    args += [wh1, bh1, w2r, b2]
    in_specs += [pl.BlockSpec((H, 2 * H), lambda i: (0, 0)),
                 pl.BlockSpec((1, 2 * H), lambda i: (0, 0)),
                 pl.BlockSpec((1, 2 * H), lambda i: (0, 0)),
                 pl.BlockSpec((1, 2), lambda i: (0, 0))]

    kernel = functools.partial(_gen_kernel, depth, binary_y,
                               matmul_dtype != jnp.float32)
    return pl.pallas_call(
        kernel,
        out_shape=jax.ShapeDtypeStruct((N, 2), jnp.float32),
        grid=grid,
        in_specs=in_specs,
        out_specs=pl.BlockSpec((tile_n, 2), lambda i: (i, 0)),
        compiler_params=pltpu.CompilerParams(
            dimension_semantics=("parallel",),
            vmem_limit_bytes=_vmem_limit_bytes(tile_n, dim, H, depth)),
    )(*args)


def _init_params(key, dim, dim_hidden, depth, n_treatments=2):
    """Deterministic init mimicking torch.nn.Linear (U(-1/sqrt(fan_in), ...))."""
    def linear(k, fan_in, fan_out):
        kw, kb = jax.random.split(k)
        bound = 1.0 / (fan_in ** 0.5)
        w = jax.random.uniform(kw, (fan_in, fan_out), jnp.float32, -bound, bound)
        b = jax.random.uniform(kb, (1, fan_out), jnp.float32, -bound, bound)
        return w, b

    keys = jax.random.split(key, 1 + depth + 2 * n_treatments)
    w0, b0 = linear(keys[0], dim + 2, dim_hidden)
    hidden = [linear(keys[1 + d], dim_hidden, dim_hidden) for d in range(depth)]
    heads = []
    for ti in range(n_treatments):
        w1, b1 = linear(keys[1 + depth + 2 * ti], dim_hidden, dim_hidden)
        w2, b2 = linear(keys[1 + depth + 2 * ti + 1], dim_hidden, 1)
        heads.append((w1, b1, w2, b2))
    return {"w0": w0, "b0": b0, "hidden": hidden, "heads": heads}


def _reference(x, t, y, params, depth, binary_y):
    """Pure-JAX reference matching the PyTorch forward (eval mode)."""
    inputs = jnp.concatenate([x, t, y], axis=1)
    h = jax.nn.leaky_relu(inputs @ params["w0"] + params["b0"], NEG_SLOPE)
    for (w, b) in params["hidden"]:
        h = jax.nn.leaky_relu(h @ w + b, NEG_SLOPE)   # Dropout = identity (eval)
    outs = []
    for (w1, b1, w2, b2) in params["heads"]:
        hh = jax.nn.leaky_relu(h @ w1 + b1, NEG_SLOPE)
        outs.append(hh @ w2 + b2)
    g = jnp.concatenate(outs, axis=1)
    return jax.nn.sigmoid(g) if binary_y else g


if __name__ == "__main__":
    # Shapes consistent with the module: Dim=16, TreatmentsCnt=2, DimHidden=32,
    # depth=2; N=1024 rows so the batch grid (TILE_N=256 -> 4 steps) is exercised.
    N, Dim, DimHidden, depth = 1024, 16, 32, 2

    key = jax.random.PRNGKey(0)
    kx, kt, ky, kp = jax.random.split(key, 4)
    x = jax.random.normal(kx, (N, Dim), jnp.float32)
    t = jax.random.bernoulli(kt, 0.5, (N, 1)).astype(jnp.float32)
    y = jax.random.normal(ky, (N, 1), jnp.float32)
    params = _init_params(kp, Dim, DimHidden, depth)

    ref = _reference(x, t, y, params, depth, binary_y=True)

    # Default path: bf16 MXU operands + f32 accumulation (v6e/v7x guidance).
    out_bf16 = counterfactual_generator(x, t, y, params, depth,
                                        binary_y=True, block_n=256)
    out_bf16 = jax.block_until_ready(out_bf16)
    assert out_bf16.shape == (N, 2)
    assert jnp.allclose(out_bf16, ref, atol=3e-2, rtol=3e-2)

    # Full-f32 path: strict numerical check against the PyTorch-equivalent math.
    out_f32 = counterfactual_generator(x, t, y, params, depth, binary_y=True,
                                       block_n=256, matmul_dtype=jnp.float32)
    out_f32 = jax.block_until_ready(out_f32)
    assert jnp.allclose(out_f32, ref, atol=5e-5, rtol=1e-5)

    print("KERNEL_OK")
</pallas_src>

<mosaic_0001>
module attributes {stable_mosaic.version = 11 : i64} {
  func.func @_gen_kernel(%arg0: i32, %arg1: memref<256x16xf32, #tpu.memory_space<vmem>>, %arg2: memref<256x2xf32, #tpu.memory_space<vmem>>, %arg3: memref<16x32xbf16, #tpu.memory_space<vmem>>, %arg4: memref<2x32xf32, #tpu.memory_space<vmem>>, %arg5: memref<1x32xf32, #tpu.memory_space<vmem>>, %arg6: memref<32x32xbf16, #tpu.memory_space<vmem>>, %arg7: memref<1x32xf32, #tpu.memory_space<vmem>>, %arg8: memref<32x32xbf16, #tpu.memory_space<vmem>>, %arg9: memref<1x32xf32, #tpu.memory_space<vmem>>, %arg10: memref<32x64xbf16, #tpu.memory_space<vmem>>, %arg11: memref<1x64xf32, #tpu.memory_space<vmem>>, %arg12: memref<1x64xf32, #tpu.memory_space<vmem>>, %arg13: memref<1x2xf32, #tpu.memory_space<vmem>>, %arg14: memref<256x2xf32, #tpu.memory_space<vmem>>) attributes {dimension_semantics = [#tpu.dimension_semantics<parallel>], iteration_bounds = array<i64: 4>, scalar_prefetch = 0 : i64, scratch_operands = 0 : i64, tpu.core_type = #tpu.core_type<tc>, window_params = [{transform_indices = @transform_0, window_bounds = array<i64: 256, 16>}, {transform_indices = @transform_1, window_bounds = array<i64: 256, 2>}, {pipeline_mode = #tpu.pipeline_mode<synchronous>, transform_indices = @transform_2, window_bounds = array<i64: 16, 32>}, {pipeline_mode = #tpu.pipeline_mode<synchronous>, transform_indices = @transform_3, window_bounds = array<i64: 2, 32>}, {pipeline_mode = #tpu.pipeline_mode<synchronous>, transform_indices = @transform_4, window_bounds = array<i64: 1, 32>}, {pipeline_mode = #tpu.pipeline_mode<synchronous>, transform_indices = @transform_5, window_bounds = array<i64: 32, 32>}, {pipeline_mode = #tpu.pipeline_mode<synchronous>, transform_indices = @transform_6, window_bounds = array<i64: 1, 32>}, {pipeline_mode = #tpu.pipeline_mode<synchronous>, transform_indices = @transform_7, window_bounds = array<i64: 32, 32>}, {pipeline_mode = #tpu.pipeline_mode<synchronous>, transform_indices = @transform_8, window_bounds = array<i64: 1, 32>}, {pipeline_mode = #tpu.pipeline_mode<synchronous>, transform_indices = @transform_9, window_bounds = array<i64: 32, 64>}, {pipeline_mode = #tpu.pipeline_mode<synchronous>, transform_indices = @transform_10, window_bounds = array<i64: 1, 64>}, {pipeline_mode = #tpu.pipeline_mode<synchronous>, transform_indices = @transform_11, window_bounds = array<i64: 1, 64>}, {pipeline_mode = #tpu.pipeline_mode<synchronous>, transform_indices = @transform_12, window_bounds = array<i64: 1, 2>}, {transform_indices = @transform_13, window_bounds = array<i64: 256, 2>}]} {
    %c0 = arith.constant 0 : index
    %c0_0 = arith.constant 0 : index
    %0 = vector.load %arg1[%c0, %c0_0] : memref<256x16xf32, #tpu.memory_space<vmem>>, vector<256x16xf32>
    %c0_1 = arith.constant 0 : index
    %c0_2 = arith.constant 0 : index
    %1 = vector.load %arg2[%c0_1, %c0_2] : memref<256x2xf32, #tpu.memory_space<vmem>>, vector<256x2xf32>
    %c0_3 = arith.constant 0 : index
    %c0_4 = arith.constant 0 : index
    %2 = vector.load %arg3[%c0_3, %c0_4] : memref<16x32xbf16, #tpu.memory_space<vmem>>, vector<16x32xbf16>
    %c0_5 = arith.constant 0 : index
    %c0_6 = arith.constant 0 : index
    %3 = vector.load %arg4[%c0_5, %c0_6] : memref<2x32xf32, #tpu.memory_space<vmem>>, vector<2x32xf32>
    %4 = arith.truncf %0 : vector<256x16xf32> to vector<256x16xbf16>
    %cst = arith.constant dense<0.000000e+00> : vector<256x32xf32>
    %5 = tpu.matmul %4, %2, %cst {dimension_numbers = #tpu.dot_dimension_numbers<[1], [0], [0], [1], [0, 0, 1, 1], [], []>} : vector<256x16xbf16>, vector<16x32xbf16>, vector<256x32xf32> -> vector<256x32xf32>
    %6 = vector.extract_strided_slice %1 {offsets = [0, 0], sizes = [256, 1], strides = [1, 1]} : vector<256x2xf32> to vector<256x1xf32>
    %7 = vector.extract_strided_slice %3 {offsets = [0, 0], sizes = [1, 32], strides = [1, 1]} : vector<2x32xf32> to vector<1x32xf32>
    %8 = vector.broadcast %6 : vector<256x1xf32> to vector<256x32xf32>
    %9 = vector.broadcast %7 : vector<1x32xf32> to vector<256x32xf32>
    %10 = arith.mulf %8, %9 : vector<256x32xf32>
    %11 = arith.addf %5, %10 : vector<256x32xf32>
    %12 = vector.extract_strided_slice %1 {offsets = [0, 1], sizes = [256, 1], strides = [1, 1]} : vector<256x2xf32> to vector<256x1xf32>
    %13 = vector.extract_strided_slice %3 {offsets = [1, 0], sizes = [1, 32], strides = [1, 1]} : vector<2x32xf32> to vector<1x32xf32>
    %14 = vector.broadcast %12 : vector<256x1xf32> to vector<256x32xf32>
    %15 = vector.broadcast %13 : vector<1x32xf32> to vector<256x32xf32>
    %16 = arith.mulf %14, %15 : vector<256x32xf32>
    %17 = arith.addf %11, %16 : vector<256x32xf32>
    %c0_7 = arith.constant 0 : index
    %c0_8 = arith.constant 0 : index
    %18 = vector.load %arg5[%c0_7, %c0_8] : memref<1x32xf32, #tpu.memory_space<vmem>>, vector<1x32xf32>
    %19 = vector.broadcast %18 : vector<1x32xf32> to vector<256x32xf32>
    %20 = arith.addf %17, %19 : vector<256x32xf32>
    %cst_9 = arith.constant 0.000000e+00 : f32
    %21 = vector.broadcast %cst_9 : f32 to vector<256x32xf32>
    %22 = arith.cmpf ogt, %20, %21 : vector<256x32xf32>
    %cst_10 = arith.constant 0.00999999977 : f32
    %23 = vector.broadcast %cst_10 : f32 to vector<256x32xf32>
    %24 = arith.mulf %23, %20 : vector<256x32xf32>
    %25 = arith.select %22, %20, %24 : vector<256x32xi1>, vector<256x32xf32>
    %c0_11 = arith.constant 0 : index
    %c0_12 = arith.constant 0 : index
    %26 = vector.load %arg6[%c0_11, %c0_12] : memref<32x32xbf16, #tpu.memory_space<vmem>>, vector<32x32xbf16>
    %c0_13 = arith.constant 0 : index
    %c0_14 = arith.constant 0 : index
    %27 = vector.load %arg7[%c0_13, %c0_14] : memref<1x32xf32, #tpu.memory_space<vmem>>, vector<1x32xf32>
    %28 = arith.truncf %25 : vector<256x32xf32> to vector<256x32xbf16>
    %cst_15 = arith.constant dense<0.000000e+00> : vector<256x32xf32>
    %29 = tpu.matmul %28, %26, %cst_15 {dimension_numbers = #tpu.dot_dimension_numbers<[1], [0], [0], [1], [0, 0, 1, 1], [], []>} : vector<256x32xbf16>, vector<32x32xbf16>, vector<256x32xf32> -> vector<256x32xf32>
    %30 = vector.broadcast %27 : vector<1x32xf32> to vector<256x32xf32>
    %31 = arith.addf %29, %30 : vector<256x32xf32>
    %cst_16 = arith.constant 0.000000e+00 : f32
    %32 = vector.broadcast %cst_16 : f32 to vector<256x32xf32>
    %33 = arith.cmpf ogt, %31, %32 : vector<256x32xf32>
    %cst_17 = arith.constant 0.00999999977 : f32
    %34 = vector.broadcast %cst_17 : f32 to vector<256x32xf32>
    %35 = arith.mulf %34, %31 : vector<256x32xf32>
    %36 = arith.select %33, %31, %35 : vector<256x32xi1>, vector<256x32xf32>
    %c0_18 = arith.constant 0 : index
    %c0_19 = arith.constant 0 : index
    %37 = vector.load %arg8[%c0_18, %c0_19] : memref<32x32xbf16, #tpu.memory_space<vmem>>, vector<32x32xbf16>
    %c0_20 = arith.constant 0 : index
    %c0_21 = arith.constant 0 : index
    %38 = vector.load %arg9[%c0_20, %c0_21] : memref<1x32xf32, #tpu.memory_space<vmem>>, vector<1x32xf32>
    %39 = arith.truncf %36 : vector<256x32xf32> to vector<256x32xbf16>
    %cst_22 = arith.constant dense<0.000000e+00> : vector<256x32xf32>
    %40 = tpu.matmul %39, %37, %cst_22 {dimension_numbers = #tpu.dot_dimension_numbers<[1], [0], [0], [1], [0, 0, 1, 1], [], []>} : vector<256x32xbf16>, vector<32x32xbf16>, vector<256x32xf32> -> vector<256x32xf32>
    %41 = vector.broadcast %38 : vector<1x32xf32> to vector<256x32xf32>
    %42 = arith.addf %40, %41 : vector<256x32xf32>
    %cst_23 = arith.constant 0.000000e+00 : f32
    %43 = vector.broadcast %cst_23 : f32 to vector<256x32xf32>
    %44 = arith.cmpf ogt, %42, %43 : vector<256x32xf32>
    %cst_24 = arith.constant 0.00999999977 : f32
    %45 = vector.broadcast %cst_24 : f32 to vector<256x32xf32>
    %46 = arith.mulf %45, %42 : vector<256x32xf32>
    %47 = arith.select %44, %42, %46 : vector<256x32xi1>, vector<256x32xf32>
    %c0_25 = arith.constant 0 : index
    %c0_26 = arith.constant 0 : index
    %48 = vector.load %arg10[%c0_25, %c0_26] : memref<32x64xbf16, #tpu.memory_space<vmem>>, vector<32x64xbf16>
    %49 = arith.truncf %47 : vector<256x32xf32> to vector<256x32xbf16>
    %cst_27 = arith.constant dense<0.000000e+00> : vector<256x64xf32>
    %50 = tpu.matmul %49, %48, %cst_27 {dimension_numbers = #tpu.dot_dimension_numbers<[1], [0], [0], [1], [0, 0, 1, 1], [], []>} : vector<256x32xbf16>, vector<32x64xbf16>, vector<256x64xf32> -> vector<256x64xf32>
    %c0_28 = arith.constant 0 : index
    %c0_29 = arith.constant 0 : index
    %51 = vector.load %arg11[%c0_28, %c0_29] : memref<1x64xf32, #tpu.memory_space<vmem>>, vector<1x64xf32>
    %52 = vector.broadcast %51 : vector<1x64xf32> to vector<256x64xf32>
    %53 = arith.addf %50, %52 : vector<256x64xf32>
    %cst_30 = arith.constant 0.000000e+00 : f32
    %54 = vector.broadcast %cst_30 : f32 to vector<256x64xf32>
    %55 = arith.cmpf ogt, %53, %54 : vector<256x64xf32>
    %cst_31 = arith.constant 0.00999999977 : f32
    %56 = vector.broadcast %cst_31 : f32 to vector<256x64xf32>
    %57 = arith.mulf %56, %53 : vector<256x64xf32>
    %58 = arith.select %55, %53, %57 : vector<256x64xi1>, vector<256x64xf32>
    %c0_32 = arith.constant 0 : index
    %c0_33 = arith.constant 0 : index
    %59 = vector.load %arg12[%c0_32, %c0_33] : memref<1x64xf32, #tpu.memory_space<vmem>>, vector<1x64xf32>
    %60 = vector.broadcast %59 : vector<1x64xf32> to vector<256x64xf32>
    %61 = arith.mulf %58, %60 : vector<256x64xf32>
    %62 = vector.extract_strided_slice %61 {offsets = [0, 0], sizes = [256, 32], strides = [1, 1]} : vector<256x64xf32> to vector<256x32xf32>
    %cst_34 = arith.constant dense<0.000000e+00> : vector<256xf32>
    %63 = vector.multi_reduction <add>, %62, %cst_34 [1] : vector<256x32xf32> to vector<256xf32>
    %64 = vector.shape_cast %63 : vector<256xf32> to vector<256x1xf32>
    %65 = vector.extract_strided_slice %61 {offsets = [0, 32], sizes = [256, 32], strides = [1, 1]} : vector<256x64xf32> to vector<256x32xf32>
    %cst_35 = arith.constant dense<0.000000e+00> : vector<256xf32>
    %66 = vector.multi_reduction <add>, %65, %cst_35 [1] : vector<256x32xf32> to vector<256xf32>
    %67 = vector.shape_cast %66 : vector<256xf32> to vector<256x1xf32>
    %68 = tpu.iota {dimensions = array<i32: 1>} : vector<256x2xi32>
    %c0_i32 = arith.constant 0 : i32
    %69 = vector.broadcast %c0_i32 : i32 to vector<256x2xi32>
    %70 = arith.cmpi eq, %68, %69 : vector<256x2xi32>
    %71 = vector.shape_cast %64 : vector<256x1xf32> to vector<256x1xf32>
    %72 = vector.broadcast %71 : vector<256x1xf32> to vector<256x2xf32>
    %73 = vector.shape_cast %67 : vector<256x1xf32> to vector<256x1xf32>
    %74 = vector.broadcast %73 : vector<256x1xf32> to vector<256x2xf32>
    %75 = arith.select %70, %72, %74 : vector<256x2xi1>, vector<256x2xf32>
    %c0_36 = arith.constant 0 : index
    %c0_37 = arith.constant 0 : index
    %76 = vector.load %arg13[%c0_36, %c0_37] : memref<1x2xf32, #tpu.memory_space<vmem>>, vector<1x2xf32>
    %77 = vector.broadcast %76 : vector<1x2xf32> to vector<256x2xf32>
    %78 = arith.addf %75, %77 : vector<256x2xf32>
    %cst_38 = arith.constant 0.000000e+00 : f32
    %79 = vector.broadcast %cst_38 : f32 to vector<256x2xf32>
    %80 = arith.subf %79, %78 : vector<256x2xf32>
    %81 = math.exp %80 : vector<256x2xf32>
    %cst_39 = arith.constant 1.000000e+00 : f32
    %82 = vector.broadcast %cst_39 : f32 to vector<256x2xf32>
    %83 = arith.addf %82, %81 : vector<256x2xf32>
    %84 = tpu.reciprocal %83 {approx = true} : vector<256x2xf32> -> vector<256x2xf32>
    %c0_40 = arith.constant 0 : index
    %c0_41 = arith.constant 0 : index
    %85 = vector.load %arg14[%c0_40, %c0_41] : memref<256x2xf32, #tpu.memory_space<vmem>>, vector<256x2xf32>
    tpu.vector_store %arg14[%c0_40, %c0_41], %84 {strides = array<i32>} : memref<256x2xf32, #tpu.memory_space<vmem>>, vector<256x2xf32>,
    return
  }
  func.func @transform_0(%arg0: i32) -> (i32, i32) {
    %c0_i32 = arith.constant 0 : i32
    %c0_i32_0 = arith.constant 0 : i32
    return %arg0, %c0_i32 : i32, i32
  }
  func.func @transform_1(%arg0: i32) -> (i32, i32) {
    %c0_i32 = arith.constant 0 : i32
    %c0_i32_0 = arith.constant 0 : i32
    return %arg0, %c0_i32 : i32, i32
  }
  func.func @transform_2(%arg0: i32) -> (i32, i32) {
    %c0_i32 = arith.constant 0 : i32
    %c0_i32_0 = arith.constant 0 : i32
    %c0_i32_1 = arith.constant 0 : i32
    return %c0_i32, %c0_i32_0 : i32, i32
  }
  func.func @transform_3(%arg0: i32) -> (i32, i32) {
    %c0_i32 = arith.constant 0 : i32
    %c0_i32_0 = arith.constant 0 : i32
    %c0_i32_1 = arith.constant 0 : i32
    return %c0_i32, %c0_i32_0 : i32, i32
  }
  func.func @transform_4(%arg0: i32) -> (i32, i32) {
    %c0_i32 = arith.constant 0 : i32
    %c0_i32_0 = arith.constant 0 : i32
    %c0_i32_1 = arith.constant 0 : i32
    return %c0_i32, %c0_i32_0 : i32, i32
  }
  func.func @transform_5(%arg0: i32) -> (i32, i32) {
    %c0_i32 = arith.constant 0 : i32
    %c0_i32_0 = arith.constant 0 : i32
    %c0_i32_1 = arith.constant 0 : i32
    return %c0_i32, %c0_i32_0 : i32, i32
  }
  func.func @transform_6(%arg0: i32) -> (i32, i32) {
    %c0_i32 = arith.constant 0 : i32
    %c0_i32_0 = arith.constant 0 : i32
    %c0_i32_1 = arith.constant 0 : i32
    return %c0_i32, %c0_i32_0 : i32, i32
  }
  func.func @transform_7(%arg0: i32) -> (i32, i32) {
    %c0_i32 = arith.constant 0 : i32
    %c0_i32_0 = arith.constant 0 : i32
    %c0_i32_1 = arith.constant 0 : i32
    return %c0_i32, %c0_i32_0 : i32, i32
  }
  func.func @transform_8(%arg0: i32) -> (i32, i32) {
    %c0_i32 = arith.constant 0 : i32
    %c0_i32_0 = arith.constant 0 : i32
    %c0_i32_1 = arith.constant 0 : i32
    return %c0_i32, %c0_i32_0 : i32, i32
  }
  func.func @transform_9(%arg0: i32) -> (i32, i32) {
    %c0_i32 = arith.constant 0 : i32
    %c0_i32_0 = arith.constant 0 : i32
    %c0_i32_1 = arith.constant 0 : i32
    return %c0_i32, %c0_i32_0 : i32, i32
  }
  func.func @transform_10(%arg0: i32) -> (i32, i32) {
    %c0_i32 = arith.constant 0 : i32
    %c0_i32_0 = arith.constant 0 : i32
    %c0_i32_1 = arith.constant 0 : i32
    return %c0_i32, %c0_i32_0 : i32, i32
  }
  func.func @transform_11(%arg0: i32) -> (i32, i32) {
    %c0_i32 = arith.constant 0 : i32
    %c0_i32_0 = arith.constant 0 : i32
    %c0_i32_1 = arith.constant 0 : i32
    return %c0_i32, %c0_i32_0 : i32, i32
  }
  func.func @transform_12(%arg0: i32) -> (i32, i32) {
    %c0_i32 = arith.constant 0 : i32
    %c0_i32_0 = arith.constant 0 : i32
    %c0_i32_1 = arith.constant 0 : i32
    return %c0_i32, %c0_i32_0 : i32, i32
  }
  func.func @transform_13(%arg0: i32) -> (i32, i32) {
    %c0_i32 = arith.constant 0 : i32
    %c0_i32_0 = arith.constant 0 : i32
    return %arg0, %c0_i32 : i32, i32
  }
}

</mosaic_0001>

<llo_original>
// kernel: tpu_custom_call.1
$region0: #{tpu_custom_call.1}
  #allocation0 [shape = 'u32[]', space=smem, size = 0x4, offset = 0x4, fixed_abs, tag = 'smem constant byte address 0x4 - core index']
  #allocation1 [shape = 'u32[144,128]{1,0:T(1,128)}', space=vmem, size = 0x12000, scoped, tag = 'internal scratch']
  %s0 = inlined_call_operand.vmem [shape: f32[1024,16], index: 0, kind: input, shape index: {}]
  %s1 = inlined_call_operand.vmem [shape: f32[1024,2], index: 1, kind: input, shape index: {}]
  %s2 = inlined_call_operand.vmem [shape: bf16[16,32], index: 2, kind: input, shape index: {}]
  %s3 = inlined_call_operand.vmem [shape: f32[2,32], index: 3, kind: input, shape index: {}]
  %s4 = inlined_call_operand.vmem [shape: f32[1,32], index: 4, kind: input, shape index: {}]
  %s5 = inlined_call_operand.vmem [shape: bf16[32,32], index: 5, kind: input, shape index: {}]
  %s6 = inlined_call_operand.vmem [shape: f32[1,32], index: 6, kind: input, shape index: {}]
  %s7 = inlined_call_operand.vmem [shape: bf16[32,32], index: 7, kind: input, shape index: {}]
  %s8 = inlined_call_operand.vmem [shape: f32[1,32], index: 8, kind: input, shape index: {}]
  %s9 = inlined_call_operand.vmem [shape: bf16[32,64], index: 9, kind: input, shape index: {}]
  %s10 = inlined_call_operand.vmem [shape: f32[1,64], index: 10, kind: input, shape index: {}]
  %s11 = inlined_call_operand.vmem [shape: f32[1,64], index: 11, kind: input, shape index: {}]
  %s12 = inlined_call_operand.vmem [shape: f32[1,2], index: 12, kind: input, shape index: {}]
  %s13 = inlined_call_operand.vmem [shape: f32[1024,2], index: 13, kind: output, shape index: {}]
  %s14 = sld [smem:[#allocation0]]
  $region85: #{tpu_custom_call.1} parent=0
    _
  %s16 = ssub.s32 1, %s14
  %s17 = scalar_select 0, %s16, %s14
  loop: start=0, step=1, limit=6
  $region2: #{tpu_custom_call.1} parent=0 // loop_pre_header
    _
  $region3: #{tpu_custom_call.1} parent=0 // loop_header
    %s19 = sphi 0, %s23
    %p20 = scmp.ge.s32.totalorder %s19, 6
    %s29 = sphi 0, %s31
    %s32 = sphi 0, %s29
    %s33 = sphi 0, %s32
    %s49 = sphi 0, %s33
    %s55 = sphi 0, %s57
    %s58 = sphi 0, %s55
    %s59 = sphi 0, %s58
    %s75 = sphi 0, %s59
    %s79 = sphi 0, %s79
    %s81 = sphi 0, %s79
    %s82 = sphi 0, %s81
    %s96 = sphi 0, %s82
    %s100 = sphi 0, %s100
    %s102 = sphi 0, %s100
    %s103 = sphi 0, %s102
    %s117 = sphi 0, %s103
    %s121 = sphi 0, %s121
    %s123 = sphi 0, %s121
    %s124 = sphi 0, %s123
    %s138 = sphi 0, %s124
    %s142 = sphi 0, %s142
    %s144 = sphi 0, %s142
    %s145 = sphi 0, %s144
    %s159 = sphi 0, %s145
    %s163 = sphi 0, %s163
    %s165 = sphi 0, %s163
    %s166 = sphi 0, %s165
    %s180 = sphi 0, %s166
    %s184 = sphi 0, %s184
    %s186 = sphi 0, %s184
    %s187 = sphi 0, %s186
    %s201 = sphi 0, %s187
    %s205 = sphi 0, %s205
    %s207 = sphi 0, %s205
    %s208 = sphi 0, %s207
    %s222 = sphi 0, %s208
    %s226 = sphi 0, %s226
    %s228 = sphi 0, %s226
    %s229 = sphi 0, %s228
    %s243 = sphi 0, %s229
    %s247 = sphi 0, %s247
    %s249 = sphi 0, %s247
    %s250 = sphi 0, %s249
    %s264 = sphi 0, %s250
    %s268 = sphi 0, %s268
    %s270 = sphi 0, %s268
    %s271 = sphi 0, %s270
    %s285 = sphi 0, %s271
    %s289 = sphi 0, %s289
    %s291 = sphi 0, %s289
    %s292 = sphi 0, %s291
    %s306 = sphi 0, %s292
    %s312 = sphi 0, %s314
    %s315 = sphi 0, %s312
    %s316 = sphi 0, %s315
    %s332 = sphi 0, %s316
  $region4: #{tpu_custom_call.1} parent=0 // loop_header_branch
    %22 = sbr.rel (%p20) target = $region8
  $region5: #{tpu_custom_call.1} parent=0 // loop_body
    %s24 = ssub.s32 %s19, 1
    %s25 = ssub.s32 %s19, 2
    %s26 = sadd.s32 %s19, 1
    %s27 = ssub.s32 %s19, %s26
    %p28 = scmp.eq.s32.totalorder %s27, 0
    %s30 = sadd.s32 %s29, 1
    %s31 = scalar_select %p28, %s29, %s30
    %p34 = pneg %p28
    %p35 = scmp.eq.s32.totalorder %s19, 3
    %p36 = por %p34, %p35
    %p37 = scmp.ne.s32.totalorder %s29, %s32
    %p38 = scmp.eq.s32.totalorder %s19, 0
    %p39 = por %p37, %p38
    %p40 = scmp.ne.s32.totalorder %s29, %s32
    %p41 = scmp.eq.s32.totalorder %s24, 3
    %p42 = por %p40, %p41
    %p43 = scmp.ne.s32.totalorder %s32, %s33
    %p44 = scmp.eq.s32.totalorder %s24, 0
    %p45 = por %p43, %p44
    %p46 = scmp.ne.s32.totalorder %s32, %s33
    %p47 = scmp.eq.s32.totalorder %s25, 3
    %p48 = por %p46, %p47
    %p50 = scmp.ne.s32.totalorder %s33, %s49
    %p51 = scmp.eq.s32.totalorder %s25, 0
    %p52 = por %p50, %p51
    %s53 = ssub.s32 %s19, %s26
    %p54 = scmp.eq.s32.totalorder %s53, 0
    %s56 = sadd.s32 %s55, 1
    %s57 = scalar_select %p54, %s55, %s56
    %p60 = pneg %p54
    %p61 = scmp.eq.s32.totalorder %s19, 3
    %p62 = por %p60, %p61
    %p63 = scmp.ne.s32.totalorder %s55, %s58
    %p64 = scmp.eq.s32.totalorder %s19, 0
    %p65 = por %p63, %p64
    %p66 = scmp.ne.s32.totalorder %s55, %s58
    %p67 = scmp.eq.s32.totalorder %s24, 3
    %p68 = por %p66, %p67
    %p69 = scmp.ne.s32.totalorder %s58, %s59
    %p70 = scmp.eq.s32.totalorder %s24, 0
    %p71 = por %p69, %p70
    %p72 = scmp.ne.s32.totalorder %s58, %s59
    %p73 = scmp.eq.s32.totalorder %s25, 3
    %p74 = por %p72, %p73
    %p76 = scmp.ne.s32.totalorder %s59, %s75
    %p77 = scmp.eq.s32.totalorder %s25, 0
    %p78 = por %p76, %p77
    %s80 = sadd.s32 %s79, 1
    %p83 = scmp.eq.s32.totalorder %s19, 3
    %p84 = scmp.ne.s32.totalorder %s79, %s81
    %p85 = scmp.eq.s32.totalorder %s19, 0
    %p86 = por %p84, %p85
    %p87 = scmp.ne.s32.totalorder %s79, %s81
    %p88 = scmp.eq.s32.totalorder %s24, 3
    %p89 = por %p87, %p88
    %p90 = scmp.ne.s32.totalorder %s81, %s82
    %p91 = scmp.eq.s32.totalorder %s24, 0
    %p92 = por %p90, %p91
    %p93 = scmp.ne.s32.totalorder %s81, %s82
    %p94 = scmp.eq.s32.totalorder %s25, 3
    %p95 = por %p93, %p94
    %p97 = scmp.ne.s32.totalorder %s82, %s96
    %p98 = scmp.eq.s32.totalorder %s25, 0
    %p99 = por %p97, %p98
    %s101 = sadd.s32 %s100, 1
    %p104 = scmp.eq.s32.totalorder %s19, 3
    %p105 = scmp.ne.s32.totalorder %s100, %s102
    %p106 = scmp.eq.s32.totalorder %s19, 0
    %p107 = por %p105, %p106
    %p108 = scmp.ne.s32.totalorder %s100, %s102
    %p109 = scmp.eq.s32.totalorder %s24, 3
    %p110 = por %p108, %p109
    %p111 = scmp.ne.s32.totalorder %s102, %s103
    %p112 = scmp.eq.s32.totalorder %s24, 0
    %p113 = por %p111, %p112
    %p114 = scmp.ne.s32.totalorder %s102, %s103
    %p115 = scmp.eq.s32.totalorder %s25, 3
    %p116 = por %p114, %p115
    %p118 = scmp.ne.s32.totalorder %s103, %s117
    %p119 = scmp.eq.s32.totalorder %s25, 0
    %p120 = por %p118, %p119
    %s122 = sadd.s32 %s121, 1
    %p125 = scmp.eq.s32.totalorder %s19, 3
    %p126 = scmp.ne.s32.totalorder %s121, %s123
    %p127 = scmp.eq.s32.totalorder %s19, 0
    %p128 = por %p126, %p127
    %p129 = scmp.ne.s32.totalorder %s121, %s123
    %p130 = scmp.eq.s32.totalorder %s24, 3
    %p131 = por %p129, %p130
    %p132 = scmp.ne.s32.totalorder %s123, %s124
    %p133 = scmp.eq.s32.totalorder %s24, 0
    %p134 = por %p132, %p133
    %p135 = scmp.ne.s32.totalorder %s123, %s124
    %p136 = scmp.eq.s32.totalorder %s25, 3
    %p137 = por %p135, %p136
    %p139 = scmp.ne.s32.totalorder %s124, %s138
    %p140 = scmp.eq.s32.totalorder %s25, 0
    %p141 = por %p139, %p140
    %s143 = sadd.s32 %s142, 1
    %p146 = scmp.eq.s32.totalorder %s19, 3
    %p147 = scmp.ne.s32.totalorder %s142, %s144
    %p148 = scmp.eq.s32.totalorder %s19, 0
    %p149 = por %p147, %p148
    %p150 = scmp.ne.s32.totalorder %s142, %s144
    %p151 = scmp.eq.s32.totalorder %s24, 3
    %p152 = por %p150, %p151
    %p153 = scmp.ne.s32.totalorder %s144, %s145
    %p154 = scmp.eq.s32.totalorder %s24, 0
    %p155 = por %p153, %p154
    %p156 = scmp.ne.s32.totalorder %s144, %s145
    %p157 = scmp.eq.s32.totalorder %s25, 3
    %p158 = por %p156, %p157
    %p160 = scmp.ne.s32.totalorder %s145, %s159
    %p161 = scmp.eq.s32.totalorder %s25, 0
    %p162 = por %p160, %p161
    %s164 = sadd.s32 %s163, 1
    %p167 = scmp.eq.s32.totalorder %s19, 3
    %p168 = scmp.ne.s32.totalorder %s163, %s165
    %p169 = scmp.eq.s32.totalorder %s19, 0
    %p170 = por %p168, %p169
    %p171 = scmp.ne.s32.totalorder %s163, %s165
    %p172 = scmp.eq.s32.totalorder %s24, 3
    %p173 = por %p171, %p172
    %p174 = scmp.ne.s32.totalorder %s165, %s166
    %p175 = scmp.eq.s32.totalorder %s24, 0
    %p176 = por %p174, %p175
    %p177 = scmp.ne.s32.totalorder %s165, %s166
    %p178 = scmp.eq.s32.totalorder %s25, 3
    %p179 = por %p177, %p178
    %p181 = scmp.ne.s32.totalorder %s166, %s180
    %p182 = scmp.eq.s32.totalorder %s25, 0
    %p183 = por %p181, %p182
    %s185 = sadd.s32 %s184, 1
    %p188 = scmp.eq.s32.totalorder %s19, 3
    %p189 = scmp.ne.s32.totalorder %s184, %s186
    %p190 = scmp.eq.s32.totalorder %s19, 0
    %p191 = por %p189, %p190
    %p192 = scmp.ne.s32.totalorder %s184, %s186
    %p193 = scmp.eq.s32.totalorder %s24, 3
    %p194 = por %p192, %p193
    %p195 = scmp.ne.s32.totalorder %s186, %s187
    %p196 = scmp.eq.s32.totalorder %s24, 0
    %p197 = por %p195, %p196
    %p198 = scmp.ne.s32.totalorder %s186, %s187
    %p199 = scmp.eq.s32.totalorder %s25, 3
    %p200 = por %p198, %p199
    %p202 = scmp.ne.s32.totalorder %s187, %s201
    %p203 = scmp.eq.s32.totalorder %s25, 0
    %p204 = por %p202, %p203
    %s206 = sadd.s32 %s205, 1
    %p209 = scmp.eq.s32.totalorder %s19, 3
    %p210 = scmp.ne.s32.totalorder %s205, %s207
    %p211 = scmp.eq.s32.totalorder %s19, 0
    %p212 = por %p210, %p211
    %p213 = scmp.ne.s32.totalorder %s205, %s207
    %p214 = scmp.eq.s32.totalorder %s24, 3
    %p215 = por %p213, %p214
    %p216 = scmp.ne.s32.totalorder %s207, %s208
    %p217 = scmp.eq.s32.totalorder %s24, 0
    %p218 = por %p216, %p217
    %p219 = scmp.ne.s32.totalorder %s207, %s208
    %p220 = scmp.eq.s32.totalorder %s25, 3
    %p221 = por %p219, %p220
    %p223 = scmp.ne.s32.totalorder %s208, %s222
    %p224 = scmp.eq.s32.totalorder %s25, 0
    %p225 = por %p223, %p224
    %s227 = sadd.s32 %s226, 1
    %p230 = scmp.eq.s32.totalorder %s19, 3
    %p231 = scmp.ne.s32.totalorder %s226, %s228
    %p232 = scmp.eq.s32.totalorder %s19, 0
    %p233 = por %p231, %p232
    %p234 = scmp.ne.s32.totalorder %s226, %s228
    %p235 = scmp.eq.s32.totalorder %s24, 3
    %p236 = por %p234, %p235
    %p237 = scmp.ne.s32.totalorder %s228, %s229
    %p238 = scmp.eq.s32.totalorder %s24, 0
    %p239 = por %p237, %p238
    %p240 = scmp.ne.s32.totalorder %s228, %s229
    %p241 = scmp.eq.s32.totalorder %s25, 3
    %p242 = por %p240, %p241
    %p244 = scmp.ne.s32.totalorder %s229, %s243
    %p245 = scmp.eq.s32.totalorder %s25, 0
    %p246 = por %p244, %p245
    %s248 = sadd.s32 %s247, 1
    %p251 = scmp.eq.s32.totalorder %s19, 3
    %p252 = scmp.ne.s32.totalorder %s247, %s249
    %p253 = scmp.eq.s32.totalorder %s19, 0
    %p254 = por %p252, %p253
    %p255 = scmp.ne.s32.totalorder %s247, %s249
    %p256 = scmp.eq.s32.totalorder %s24, 3
    %p257 = por %p255, %p256
    %p258 = scmp.ne.s32.totalorder %s249, %s250
    %p259 = scmp.eq.s32.totalorder %s24, 0
    %p260 = por %p258, %p259
    %p261 = scmp.ne.s32.totalorder %s249, %s250
    %p262 = scmp.eq.s32.totalorder %s25, 3
    %p263 = por %p261, %p262
    %p265 = scmp.ne.s32.totalorder %s250, %s264
    %p266 = scmp.eq.s32.totalorder %s25, 0
    %p267 = por %p265, %p266
    %s269 = sadd.s32 %s268, 1
    %p272 = scmp.eq.s32.totalorder %s19, 3
    %p273 = scmp.ne.s32.totalorder %s268, %s270
    %p274 = scmp.eq.s32.totalorder %s19, 0
    %p275 = por %p273, %p274
    %p276 = scmp.ne.s32.totalorder %s268, %s270
    %p277 = scmp.eq.s32.totalorder %s24, 3
    %p278 = por %p276, %p277
    %p279 = scmp.ne.s32.totalorder %s270, %s271
    %p280 = scmp.eq.s32.totalorder %s24, 0
    %p281 = por %p279, %p280
    %p282 = scmp.ne.s32.totalorder %s270, %s271
    %p283 = scmp.eq.s32.totalorder %s25, 3
    %p284 = por %p282, %p283
    %p286 = scmp.ne.s32.totalorder %s271, %s285
    %p287 = scmp.eq.s32.totalorder %s25, 0
    %p288 = por %p286, %p287
    %s290 = sadd.s32 %s289, 1
    %p293 = scmp.eq.s32.totalorder %s19, 3
    %p294 = scmp.ne.s32.totalorder %s289, %s291
    %p295 = scmp.eq.s32.totalorder %s19, 0
    %p296 = por %p294, %p295
    %p297 = scmp.ne.s32.totalorder %s289, %s291
    %p298 = scmp.eq.s32.totalorder %s24, 3
    %p299 = por %p297, %p298
    %p300 = scmp.ne.s32.totalorder %s291, %s292
    %p301 = scmp.eq.s32.totalorder %s24, 0
    %p302 = por %p300, %p301
    %p303 = scmp.ne.s32.totalorder %s291, %s292
    %p304 = scmp.eq.s32.totalorder %s25, 3
    %p305 = por %p303, %p304
    %p307 = scmp.ne.s32.totalorder %s292, %s306
    %p308 = scmp.eq.s32.totalorder %s25, 0
    %p309 = por %p307, %p308
    %s310 = ssub.s32 %s19, %s26
    %p311 = scmp.eq.s32.totalorder %s310, 0
    %s313 = sadd.s32 %s312, 1
    %s314 = scalar_select %p311, %s312, %s313
    %p317 = pneg %p311
    %p318 = scmp.eq.s32.totalorder %s19, 3
    %p319 = por %p317, %p318
    %p320 = scmp.ne.s32.totalorder %s312, %s315
    %p321 = scmp.eq.s32.totalorder %s19, 0
    %p322 = por %p320, %p321
    %p323 = scmp.ne.s32.totalorder %s312, %s315
    %p324 = scmp.eq.s32.totalorder %s24, 3
    %p325 = por %p323, %p324
    %p326 = scmp.ne.s32.totalorder %s315, %s316
    %p327 = scmp.eq.s32.totalorder %s24, 0
    %p328 = por %p326, %p327
    %p329 = scmp.ne.s32.totalorder %s315, %s316
    %p330 = scmp.eq.s32.totalorder %s25, 3
    %p331 = por %p329, %p330
    %p333 = scmp.ne.s32.totalorder %s316, %s332
    %p334 = scmp.eq.s32.totalorder %s25, 0
    %p335 = por %p333, %p334
    %p336 = scmp.le.s32.totalorder 1, %s19
    %p337 = scmp.lt.s32.totalorder %s19, 5
    %p338 = pnand %p336, %p337
    %p339 = pneg %p338
    // Predicated region
    $region9: #{tpu_custom_call.1} parent=5 // pred_check
      _
    $region10: #{tpu_custom_call.1} parent=5 // pred_check_branch
      %341 = sbr.rel (%p338) target = $region12
    $region11: #{tpu_custom_call.1} parent=5 // pred_region
      %s342 = ssub.s32 %s19, 1
      // Predicated region
      $region13: #{tpu_custom_call.1} parent=11 // pred_check
        %p343 = pneg %p92
      $region14: #{tpu_custom_call.1} parent=11 // pred_check_branch
        %345 = sbr.rel (%p343) target = $region16
      $region15: #{tpu_custom_call.1} parent=11 // pred_region
        _
      $region16: #{tpu_custom_call.1} parent=11 // pred_fallthru
        _
      // Predicated region
      $region17: #{tpu_custom_call.1} parent=11 // pred_check
        %p346 = pneg %p113
      $region18: #{tpu_custom_call.1} parent=11 // pred_check_branch
        %348 = sbr.rel (%p346) target = $region20
      $region19: #{tpu_custom_call.1} parent=11 // pred_region
        _
      $region20: #{tpu_custom_call.1} parent=11 // pred_fallthru
        _
      // Predicated region
      $region21: #{tpu_custom_call.1} parent=11 // pred_check
        %p349 = pneg %p134
      $region22: #{tpu_custom_call.1} parent=11 // pred_check_branch
        %351 = sbr.rel (%p349) target = $region24
      $region23: #{tpu_custom_call.1} parent=11 // pred_region
        _
      $region24: #{tpu_custom_call.1} parent=11 // pred_fallthru
        _
      // Predicated region
      $region25: #{tpu_custom_call.1} parent=11 // pred_check
        %p352 = pneg %p155
      $region26: #{tpu_custom_call.1} parent=11 // pred_check_branch
        %354 = sbr.rel (%p352) target = $region28
      $region27: #{tpu_custom_call.1} parent=11 // pred_region
        _
      $region28: #{tpu_custom_call.1} parent=11 // pred_fallthru
        _
      // Predicated region
      $region29: #{tpu_custom_call.1} parent=11 // pred_check
        %p355 = pneg %p176
      $region30: #{tpu_custom_call.1} parent=11 // pred_check_branch
        %357 = sbr.rel (%p355) target = $region32
      $region31: #{tpu_custom_call.1} parent=11 // pred_region
        _
      $region32: #{tpu_custom_call.1} parent=11 // pred_fallthru
        _
      // Predicated region
      $region33: #{tpu_custom_call.1} parent=11 // pred_check
        %p358 = pneg %p197
      $region34: #{tpu_custom_call.1} parent=11 // pred_check_branch
        %360 = sbr.rel (%p358) target = $region36
      $region35: #{tpu_custom_call.1} parent=11 // pred_region
        _
      $region36: #{tpu_custom_call.1} parent=11 // pred_fallthru
        _
      // Predicated region
      $region37: #{tpu_custom_call.1} parent=11 // pred_check
        %p361 = pneg %p218
      $region38: #{tpu_custom_call.1} parent=11 // pred_check_branch
        %363 = sbr.rel (%p361) target = $region40
      $region39: #{tpu_custom_call.1} parent=11 // pred_region
        _
      $region40: #{tpu_custom_call.1} parent=11 // pred_fallthru
        _
      // Predicated region
      $region41: #{tpu_custom_call.1} parent=11 // pred_check
        %p364 = pneg %p239
      $region42: #{tpu_custom_call.1} parent=11 // pred_check_branch
        %366 = sbr.rel (%p364) target = $region44
      $region43: #{tpu_custom_call.1} parent=11 // pred_region
        _
      $region44: #{tpu_custom_call.1} parent=11 // pred_fallthru
        _
      // Predicated region
      $region45: #{tpu_custom_call.1} parent=11 // pred_check
        %p367 = pneg %p260
      $region46: #{tpu_custom_call.1} parent=11 // pred_check_branch
        %369 = sbr.rel (%p367) target = $region48
      $region47: #{tpu_custom_call.1} parent=11 // pred_region
        _
      $region48: #{tpu_custom_call.1} parent=11 // pred_fallthru
        _
      // Predicated region
      $region49: #{tpu_custom_call.1} parent=11 // pred_check
        %p370 = pneg %p281
      $region50: #{tpu_custom_call.1} parent=11 // pred_check_branch
        %372 = sbr.rel (%p370) target = $region52
      $region51: #{tpu_custom_call.1} parent=11 // pred_region
        _
      $region52: #{tpu_custom_call.1} parent=11 // pred_fallthru
        _
      // Predicated region
      $region53: #{tpu_custom_call.1} parent=11 // pred_check
        %p373 = pneg %p302
      $region54: #{tpu_custom_call.1} parent=11 // pred_check_branch
        %375 = sbr.rel (%p373) target = $region56
      $region55: #{tpu_custom_call.1} parent=11 // pred_region
        _
      $region56: #{tpu_custom_call.1} parent=11 // pred_fallthru
        _
    $region12: #{tpu_custom_call.1} parent=5 // pred_fallthru
      _
    %p376 = scmp.lt.s32.totalorder %s19, 4
    // Predicated region
    $region57: #{tpu_custom_call.1} parent=5 // pred_check
      %p377 = pneg %p376
    $region58: #{tpu_custom_call.1} parent=5 // pred_check_branch
      %379 = sbr.rel (%p377) target = $region60
    $region59: #{tpu_custom_call.1} parent=5 // pred_region
      // Predicated region
      $region61: #{tpu_custom_call.1} parent=59 // pred_check
        %p380 = pneg %p39
      $region62: #{tpu_custom_call.1} parent=59 // pred_check_branch
        %382 = sbr.rel (%p380) target = $region64
      $region63: #{tpu_custom_call.1} parent=59 // pred_region
        %s383 = smul.u32 32, %s19
        %p384 = scmp.lt.s32.totalorder %s383, 127
        %s385 = scalar_select %p384, %s383, 127
        %s386 = smul.addr %s385, 8
        %s387 = scalar_lea.vmem %s0, %s386
        %s388 = smul.u32 32, %s19
      $region64: #{tpu_custom_call.1} parent=59 // pred_fallthru
        _
      // Predicated region
      $region65: #{tpu_custom_call.1} parent=59 // pred_check
        %p389 = pneg %p65
      $region66: #{tpu_custom_call.1} parent=59 // pred_check_branch
        %391 = sbr.rel (%p389) target = $region68
      $region67: #{tpu_custom_call.1} parent=59 // pred_region
        %s392 = smul.u32 32, %s19
        %p393 = scmp.lt.s32.totalorder %s392, 127
        %s394 = scalar_select %p393, %s392, 127
        %s395 = smul.addr %s394, 8
        %s396 = scalar_lea.vmem %s1, %s395
        %s397 = smul.u32 32, %s19
      $region68: #{tpu_custom_call.1} parent=59 // pred_fallthru
        _
    $region60: #{tpu_custom_call.1} parent=5 // pred_fallthru
      _
    %p398 = scmp.le.s32.totalorder 1, %s19
    %p399 = scmp.lt.s32.totalorder %s19, 5
    %p400 = pnand %p398, %p399
    %p401 = pneg %p400
    // Predicated region
    $region69: #{tpu_custom_call.1} parent=5 // pred_check
      _
    $region70: #{tpu_custom_call.1} parent=5 // pred_check_branch
      %403 = sbr.rel (%p400) target = $region72
    $region71: #{tpu_custom_call.1} parent=5 // pred_region
      %s404 = ssub.s32 %s19, 1
      %s405 = smul.u32 32, %s24
      %p406 = scmp.lt.s32.totalorder %s405, 127
      %s407 = scalar_select %p406, %s405, 127
      %s408 = smul.addr %s407, 8
      %s409 = scalar_lea.vmem %s0, %s408
      %p410 = pneg %p45
      %p411 = pneg %p42
      %s412 = smul.u32 32, %s24
      %p413 = scmp.lt.s32.totalorder %s412, 127
      %s414 = scalar_select %p413, %s412, 127
      %s415 = smul.addr %s414, 8
      %s416 = scalar_lea.vmem %s1, %s415
      %p417 = pneg %p71
      %p418 = pneg %p68
      %p419 = pneg %p92
      %p420 = pneg %p89
      %p421 = pneg %p113
      %p422 = pneg %p110
      %p423 = pneg %p134
      %p424 = pneg %p131
      %p425 = pneg %p155
      %p426 = pneg %p152
      %p427 = pneg %p176
      %p428 = pneg %p173
      %p429 = pneg %p197
      %p430 = pneg %p194
      %p431 = pneg %p218
      %p432 = pneg %p215
      %p433 = pneg %p239
      %p434 = pneg %p236
      %p435 = pneg %p260
      %p436 = pneg %p257
      %p437 = pneg %p281
      %p438 = pneg %p278
      %p439 = pneg %p302
      %p440 = pneg %p299
      %p441 = pneg %p328
      %p442 = pneg %p325
      %s443 = smul.u32 32, %s24
      %p444 = scmp.lt.s32.totalorder %s443, 127
      %s445 = scalar_select %p444, %s443, 127
      %s446 = smul.addr %s445, 8
      %s447 = scalar_lea.vmem %s13, %s446
      %s448 = smul.u32 32, %s24
      %p449 = scmp.lt.s32.totalorder %s448, 127
      %s450 = scalar_select %p449, %s448, 127
      %s451 = smul.addr %s450, 8
      %s452 = scalar_lea.vmem %s0, %s451
      %s453 = smul.u32 32, %s24
      %s454 = smul.u32 32, %s24
      %p455 = scmp.lt.s32.totalorder %s454, 127
      %s456 = scalar_select %p455, %s454, 127
      %s457 = smul.addr %s456, 8
      %s458 = scalar_lea.vmem %s1, %s457
      %s459 = smul.u32 32, %s24
      %s460 = smul.u32 32, %s24
      %p461 = scmp.lt.s32.totalorder %s460, 127
      %s462 = scalar_select %p461, %s460, 127
      %s463 = smul.addr %s462, 8
      %s464 = scalar_lea.vmem %s13, %s463
      %s465 = smul.u32 32, %s24
      %v467 = vld [vmem:[%s452] sm:$0xff]
      %v468 = vld [vmem:[%s452 + $0x8] sm:$0xff]
      %v469 = vld [vmem:[%s452 + $0x10] sm:$0xff]
      %v470 = vld [vmem:[%s452 + $0x18] sm:$0xff]
      %v471 = vld [vmem:[%s452 + $0x20] sm:$0xff]
      %v472 = vld [vmem:[%s452 + $0x28] sm:$0xff]
      %v473 = vld [vmem:[%s452 + $0x30] sm:$0xff]
      %v474 = vld [vmem:[%s452 + $0x38] sm:$0xff]
      %v475 = vld [vmem:[%s452 + $0x40] sm:$0xff]
      %v476 = vld [vmem:[%s452 + $0x48] sm:$0xff]
      %v477 = vld [vmem:[%s452 + $0x50] sm:$0xff]
      %v478 = vld [vmem:[%s452 + $0x58] sm:$0xff]
      %v479 = vld [vmem:[%s452 + $0x60] sm:$0xff]
      %v480 = vld [vmem:[%s452 + $0x68] sm:$0xff]
      %v481 = vld [vmem:[%s452 + $0x70] sm:$0xff]
      %v482 = vld [vmem:[%s452 + $0x78] sm:$0xff]
      %v483 = vld [vmem:[%s452 + $0x80] sm:$0xff]
      %v484 = vld [vmem:[%s452 + $0x88] sm:$0xff]
      %v485 = vld [vmem:[%s452 + $0x90] sm:$0xff]
      %v486 = vld [vmem:[%s452 + $0x98] sm:$0xff]
      %v487 = vld [vmem:[%s452 + $0xa0] sm:$0xff]
      %v488 = vld [vmem:[%s452 + $0xa8] sm:$0xff]
      %v489 = vld [vmem:[%s452 + $0xb0] sm:$0xff]
      %v490 = vld [vmem:[%s452 + $0xb8] sm:$0xff]
      %v491 = vld [vmem:[%s452 + $0xc0] sm:$0xff]
      %v492 = vld [vmem:[%s452 + $0xc8] sm:$0xff]
      %v493 = vld [vmem:[%s452 + $0xd0] sm:$0xff]
      %v494 = vld [vmem:[%s452 + $0xd8] sm:$0xff]
      %v495 = vld [vmem:[%s452 + $0xe0] sm:$0xff]
      %v496 = vld [vmem:[%s452 + $0xe8] sm:$0xff]
      %v497 = vld [vmem:[%s452 + $0xf0] sm:$0xff]
      %v498 = vld [vmem:[%s452 + $0xf8] sm:$0xff]
      %v499 = vld [vmem:[%s458] sm:$0xff]
      %v500 = vld [vmem:[%s458 + $0x8] sm:$0xff]
      %v501 = vld [vmem:[%s458 + $0x10] sm:$0xff]
      %v502 = vld [vmem:[%s458 + $0x18] sm:$0xff]
      %v503 = vld [vmem:[%s458 + $0x20] sm:$0xff]
      %v504 = vld [vmem:[%s458 + $0x28] sm:$0xff]
      %v505 = vld [vmem:[%s458 + $0x30] sm:$0xff]
      %v506 = vld [vmem:[%s458 + $0x38] sm:$0xff]
      %v507 = vld [vmem:[%s458 + $0x40] sm:$0xff]
      %v508 = vld [vmem:[%s458 + $0x48] sm:$0xff]
      %v509 = vld [vmem:[%s458 + $0x50] sm:$0xff]
      %v510 = vld [vmem:[%s458 + $0x58] sm:$0xff]
      %v511 = vld [vmem:[%s458 + $0x60] sm:$0xff]
      %v512 = vld [vmem:[%s458 + $0x68] sm:$0xff]
      %v513 = vld [vmem:[%s458 + $0x70] sm:$0xff]
      %v514 = vld [vmem:[%s458 + $0x78] sm:$0xff]
      %v515 = vld [vmem:[%s458 + $0x80] sm:$0xff]
      %v516 = vld [vmem:[%s458 + $0x88] sm:$0xff]
      %v517 = vld [vmem:[%s458 + $0x90] sm:$0xff]
      %v518 = vld [vmem:[%s458 + $0x98] sm:$0xff]
      %v519 = vld [vmem:[%s458 + $0xa0] sm:$0xff]
      %v520 = vld [vmem:[%s458 + $0xa8] sm:$0xff]
      %v521 = vld [vmem:[%s458 + $0xb0] sm:$0xff]
      %v522 = vld [vmem:[%s458 + $0xb8] sm:$0xff]
      %v523 = vld [vmem:[%s458 + $0xc0] sm:$0xff]
      %v524 = vld [vmem:[%s458 + $0xc8] sm:$0xff]
      %v525 = vld [vmem:[%s458 + $0xd0] sm:$0xff]
      %v526 = vld [vmem:[%s458 + $0xd8] sm:$0xff]
      %v527 = vld [vmem:[%s458 + $0xe0] sm:$0xff]
      %v528 = vld [vmem:[%s458 + $0xe8] sm:$0xff]
      %v529 = vld [vmem:[%s458 + $0xf0] sm:$0xff]
      %v530 = vld [vmem:[%s458 + $0xf8] sm:$0xff]
      %v531 = vld [vmem:[%s2] sm:$0xf]
      %v532 = vld [vmem:[%s2 + $0x4] sm:$0xf]
      %v533 = vld [vmem:[%s3] sm:$0x3]
      %v534 = vpack.c.bf16 %v468, %v467
      %v535 = vpack.c.bf16 %v470, %v469
      %v536 = vpack.c.bf16 %v472, %v471
      %v537 = vpack.c.bf16 %v474, %v473
      %v538 = vpack.c.bf16 %v476, %v475
      %v539 = vpack.c.bf16 %v478, %v477
      %v540 = vpack.c.bf16 %v480, %v479
      %v541 = vpack.c.bf16 %v482, %v481
      %v542 = vpack.c.bf16 %v484, %v483
      %v543 = vpack.c.bf16 %v486, %v485
      %v544 = vpack.c.bf16 %v488, %v487
      %v545 = vpack.c.bf16 %v490, %v489
      %v546 = vpack.c.bf16 %v492, %v491
      %v547 = vpack.c.bf16 %v494, %v493
      %v548 = vpack.c.bf16 %v496, %v495
      %v549 = vpack.c.bf16 %v498, %v497
      %551 = vset.pattern.permute.xlu0 0
      %552 = vperm.xlu0 %551, %v499
      %v553 = vpop.permute.xlu0 %552
      %556 = vset.pattern.permute.xlu0 0
      %557 = vperm.xlu0 %556, %v500
      %v558 = vpop.permute.xlu0 %557
      %561 = vset.pattern.permute.xlu0 0
      %562 = vperm.xlu0 %561, %v501
      %v563 = vpop.permute.xlu0 %562
      %566 = vset.pattern.permute.xlu0 0
      %567 = vperm.xlu0 %566, %v502
      %v568 = vpop.permute.xlu0 %567
      %571 = vset.pattern.permute.xlu0 0
      %572 = vperm.xlu0 %571, %v503
      %v573 = vpop.permute.xlu0 %572
      %576 = vset.pattern.permute.xlu0 0
      %577 = vperm.xlu0 %576, %v504
      %v578 = vpop.permute.xlu0 %577
      %581 = vset.pattern.permute.xlu0 0
      %582 = vperm.xlu0 %581, %v505
      %v583 = vpop.permute.xlu0 %582
      %586 = vset.pattern.permute.xlu0 0
      %587 = vperm.xlu0 %586, %v506
      %v588 = vpop.permute.xlu0 %587
      %591 = vset.pattern.permute.xlu0 0
      %592 = vperm.xlu0 %591, %v507
      %v593 = vpop.permute.xlu0 %592
      %596 = vset.pattern.permute.xlu0 0
      %597 = vperm.xlu0 %596, %v508
      %v598 = vpop.permute.xlu0 %597
      %601 = vset.pattern.permute.xlu0 0
      %602 = vperm.xlu0 %601, %v509
      %v603 = vpop.permute.xlu0 %602
      %606 = vset.pattern.permute.xlu0 0
      %607 = vperm.xlu0 %606, %v510
      %v608 = vpop.permute.xlu0 %607
      %611 = vset.pattern.permute.xlu0 0
      %612 = vperm.xlu0 %611, %v511
      %v613 = vpop.permute.xlu0 %612
      %616 = vset.pattern.permute.xlu0 0
      %617 = vperm.xlu0 %616, %v512
      %v618 = vpop.permute.xlu0 %617
      %621 = vset.pattern.permute.xlu0 0
      %622 = vperm.xlu0 %621, %v513
      %v623 = vpop.permute.xlu0 %622
      %626 = vset.pattern.permute.xlu0 0
      %627 = vperm.xlu0 %626, %v514
      %v628 = vpop.permute.xlu0 %627
      %631 = vset.pattern.permute.xlu0 0
      %632 = vperm.xlu0 %631, %v515
      %v633 = vpop.permute.xlu0 %632
      %636 = vset.pattern.permute.xlu0 0
      %637 = vperm.xlu0 %636, %v516
      %v638 = vpop.permute.xlu0 %637
      %641 = vset.pattern.permute.xlu0 0
      %642 = vperm.xlu0 %641, %v517
      %v643 = vpop.permute.xlu0 %642
      %646 = vset.pattern.permute.xlu0 0
      %647 = vperm.xlu0 %646, %v518
      %v648 = vpop.permute.xlu0 %647
      %651 = vset.pattern.permute.xlu0 0
      %652 = vperm.xlu0 %651, %v519
      %v653 = vpop.permute.xlu0 %652
      %656 = vset.pattern.permute.xlu0 0
      %657 = vperm.xlu0 %656, %v520
      %v658 = vpop.permute.xlu0 %657
      %661 = vset.pattern.permute.xlu0 0
      %662 = vperm.xlu0 %661, %v521
      %v663 = vpop.permute.xlu0 %662
      %666 = vset.pattern.permute.xlu0 0
      %667 = vperm.xlu0 %666, %v522
      %v668 = vpop.permute.xlu0 %667
      %671 = vset.pattern.permute.xlu0 0
      %672 = vperm.xlu0 %671, %v523
      %v673 = vpop.permute.xlu0 %672
      %676 = vset.pattern.permute.xlu0 0
      %677 = vperm.xlu0 %676, %v524
      %v678 = vpop.permute.xlu0 %677
      %681 = vset.pattern.permute.xlu0 0
      %682 = vperm.xlu0 %681, %v525
      %v683 = vpop.permute.xlu0 %682
      %686 = vset.pattern.permute.xlu0 0
      %687 = vperm.xlu0 %686, %v526
      %v688 = vpop.permute.xlu0 %687
      %691 = vset.pattern.permute.xlu0 0
      %692 = vperm.xlu0 %691, %v527
      %v693 = vpop.permute.xlu0 %692
      %696 = vset.pattern.permute.xlu0 0
      %697 = vperm.xlu0 %696, %v528
      %v698 = vpop.permute.xlu0 %697
      %701 = vset.pattern.permute.xlu0 0
      %702 = vperm.xlu0 %701, %v529
      %v703 = vpop.permute.xlu0 %702
      %706 = vset.pattern.permute.xlu0 0
      %707 = vperm.xlu0 %706, %v530
      %v708 = vpop.permute.xlu0 %707
      %v710 = vlaneseq
      %v711 = vshrl.u32 %v710, 7
      %v712 = vsub.s32 0, %v711
      %v713 = vrot.slane %v533, %v712
      %v714 = vmul.f32 %v553, %v713
      %v715 = vmul.f32 %v558, %v713
      %v716 = vmul.f32 %v563, %v713
      %v717 = vmul.f32 %v568, %v713
      %v718 = vmul.f32 %v573, %v713
      %v719 = vmul.f32 %v578, %v713
      %v720 = vmul.f32 %v583, %v713
      %v721 = vmul.f32 %v588, %v713
      %v722 = vmul.f32 %v593, %v713
      %v723 = vmul.f32 %v598, %v713
      %v724 = vmul.f32 %v603, %v713
      %v725 = vmul.f32 %v608, %v713
      %v726 = vmul.f32 %v613, %v713
      %v727 = vmul.f32 %v618, %v713
      %v728 = vmul.f32 %v623, %v713
      %v729 = vmul.f32 %v628, %v713
      %v730 = vmul.f32 %v633, %v713
      %v731 = vmul.f32 %v638, %v713
      %v732 = vmul.f32 %v643, %v713
      %v733 = vmul.f32 %v648, %v713
      %v734 = vmul.f32 %v653, %v713
      %v735 = vmul.f32 %v658, %v713
      %v736 = vmul.f32 %v663, %v713
      %v737 = vmul.f32 %v668, %v713
      %v738 = vmul.f32 %v673, %v713
      %v739 = vmul.f32 %v678, %v713
      %v740 = vmul.f32 %v683, %v713
      %v741 = vmul.f32 %v688, %v713
      %v742 = vmul.f32 %v693, %v713
      %v743 = vmul.f32 %v698, %v713
      %v744 = vmul.f32 %v703, %v713
      %v745 = vmul.f32 %v708, %v713
      %v748 = vunpack.c.l.b16 %v531
      %v749 = vunpack.c.l.b16 %v532
      %v750 = vpack.c.b16 %v749, %v748
      %vm752 = vcmask 130048
      %v754 = vsel %vm752, %v534, 0
      %v757 = vsel %vm752, %v535, 0
      %v760 = vsel %vm752, %v536, 0
      %v763 = vsel %vm752, %v537, 0
      %v766 = vsel %vm752, %v538, 0
      %v769 = vsel %vm752, %v539, 0
      %v772 = vsel %vm752, %v540, 0
      %v775 = vsel %vm752, %v541, 0
      %v778 = vsel %vm752, %v542, 0
      %v781 = vsel %vm752, %v543, 0
      %v784 = vsel %vm752, %v544, 0
      %v787 = vsel %vm752, %v545, 0
      %v790 = vsel %vm752, %v546, 0
      %v793 = vsel %vm752, %v547, 0
      %v796 = vsel %vm752, %v548, 0
      %v799 = vsel %vm752, %v549, 0
      %801 = vmatprep.subr.bf16.mxu0 0
      %802 = vmatpush1.bf16.msra.mxu0 0
      %803 = vmatprep.subr.bf16.mxu0 0
      %804 = vmatpush1.bf16.msra.mxu0 0
      %805 = vmatprep.subr.bf16.mxu0 0
      %806 = vmatpush1.bf16.msra.mxu0 0
      %807 = vmatprep.subr.bf16.mxu0 0
      %808 = vmatpush1.bf16.msra.mxu0 0
      %809 = vmatprep.subr.bf16.mxu0 0
      %810 = vmatpush1.bf16.msra.mxu0 0
      %811 = vmatprep.subr.bf16.mxu0 0
      %812 = vmatpush1.bf16.msra.mxu0 0
      %813 = vmatprep.subr.bf16.mxu0 0
      %814 = vmatpush1.bf16.msra.mxu0 0
      %815 = vmatprep.subr.bf16.mxu0 0
      %816 = vmatpush1.bf16.msra.mxu0 %v750
      %817 = vmatprep.subr.bf16.mxu0 0
      %818 = vmatpush2.bf16.msra.mxu0 0
      %819 = vmatprep.subr.bf16.mxu0 0
      %820 = vmatpush2.bf16.msra.mxu0 0
      %821 = vmatprep.subr.bf16.mxu0 0
      %822 = vmatpush2.bf16.msra.mxu0 0
      %823 = vmatprep.subr.bf16.mxu0 0
      %824 = vmatpush2.bf16.msra.mxu0 0
      %825 = vmatprep.subr.bf16.mxu0 0
      %826 = vmatpush2.bf16.msra.mxu0 0
      %827 = vmatprep.subr.bf16.mxu0 0
      %828 = vmatpush2.bf16.msra.mxu0 0
      %829 = vmatprep.subr.bf16.mxu0 0
      %830 = vmatpush2.bf16.msra.mxu0 0
      %831 = vmatprep.subr.bf16.mxu0 0
      %832 = vmatpush2.bf16.msra.mxu0 0
      %833 = vmatprep.mubr.bf16.mxu0 0
      %834 = vmatmul.mubr.bf16.gmra.mxu0 %v754
      %v835 = vpop.f32.mrf.mxu0
      %v836 = vadd.f32 %v714, %v835
      %v837 = vpop.f32.mrf.mxu0
      %v838 = vpop.f32.mrf.mxu0
      %v839 = vadd.f32 %v715, %v838
      %v840 = vpop.f32.mrf.mxu0
      %841 = vmatprep.mubr.bf16.mxu0 0
      %842 = vmatmul.mubr.bf16.gmra.mxu0 %v757
      %v843 = vpop.f32.mrf.mxu0
      %v844 = vadd.f32 %v716, %v843
      %v845 = vpop.f32.mrf.mxu0
      %v846 = vpop.f32.mrf.mxu0
      %v847 = vadd.f32 %v717, %v846
      %v848 = vpop.f32.mrf.mxu0
      %849 = vmatprep.mubr.bf16.mxu0 0
      %850 = vmatmul.mubr.bf16.gmra.mxu0 %v760
      %v851 = vpop.f32.mrf.mxu0
      %v852 = vadd.f32 %v718, %v851
      %v853 = vpop.f32.mrf.mxu0
      %v854 = vpop.f32.mrf.mxu0
      %v855 = vadd.f32 %v719, %v854
      %v856 = vpop.f32.mrf.mxu0
      %857 = vmatprep.mubr.bf16.mxu0 0
      %858 = vmatmul.mubr.bf16.gmra.mxu0 %v763
      %v859 = vpop.f32.mrf.mxu0
      %v860 = vadd.f32 %v720, %v859
      %v861 = vpop.f32.mrf.mxu0
      %v862 = vpop.f32.mrf.mxu0
      %v863 = vadd.f32 %v721, %v862
      %v864 = vpop.f32.mrf.mxu0
      %865 = vmatprep.mubr.bf16.mxu0 0
      %866 = vmatmul.mubr.bf16.gmra.mxu0 %v766
      %v867 = vpop.f32.mrf.mxu0
      %v868 = vadd.f32 %v722, %v867
      %v869 = vpop.f32.mrf.mxu0
      %v870 = vpop.f32.mrf.mxu0
      %v871 = vadd.f32 %v723, %v870
      %v872 = vpop.f32.mrf.mxu0
      %873 = vmatprep.mubr.bf16.mxu0 0
      %874 = vmatmul.mubr.bf16.gmra.mxu0 %v769
      %v875 = vpop.f32.mrf.mxu0
      %v876 = vadd.f32 %v724, %v875
      %v877 = vpop.f32.mrf.mxu0
      %v878 = vpop.f32.mrf.mxu0
      %v879 = vadd.f32 %v725, %v878
      %v880 = vpop.f32.mrf.mxu0
      %881 = vmatprep.mubr.bf16.mxu0 0
      %882 = vmatmul.mubr.bf16.gmra.mxu0 %v772
      %v883 = vpop.f32.mrf.mxu0
      %v884 = vadd.f32 %v726, %v883
      %v885 = vpop.f32.mrf.mxu0
      %v886 = vpop.f32.mrf.mxu0
      %v887 = vadd.f32 %v727, %v886
      %v888 = vpop.f32.mrf.mxu0
      %889 = vmatprep.mubr.bf16.mxu0 0
      %890 = vmatmul.mubr.bf16.gmra.mxu0 %v775
      %v891 = vpop.f32.mrf.mxu0
      %v892 = vadd.f32 %v728, %v891
      %v893 = vpop.f32.mrf.mxu0
      %v894 = vpop.f32.mrf.mxu0
      %v895 = vadd.f32 %v729, %v894
      %v896 = vpop.f32.mrf.mxu0
      %897 = vmatprep.mubr.bf16.mxu0 0
      %898 = vmatmul.mubr.bf16.gmra.mxu0 %v778
      %v899 = vpop.f32.mrf.mxu0
      %v900 = vadd.f32 %v730, %v899
      %v901 = vpop.f32.mrf.mxu0
      %v902 = vpop.f32.mrf.mxu0
      %v903 = vadd.f32 %v731, %v902
      %v904 = vpop.f32.mrf.mxu0
      %905 = vmatprep.mubr.bf16.mxu0 0
      %906 = vmatmul.mubr.bf16.gmra.mxu0 %v781
      %v907 = vpop.f32.mrf.mxu0
      %v908 = vadd.f32 %v732, %v907
      %v909 = vpop.f32.mrf.mxu0
      %v910 = vpop.f32.mrf.mxu0
      %v911 = vadd.f32 %v733, %v910
      %v912 = vpop.f32.mrf.mxu0
      %913 = vmatprep.mubr.bf16.mxu0 0
      %914 = vmatmul.mubr.bf16.gmra.mxu0 %v784
      %v915 = vpop.f32.mrf.mxu0
      %v916 = vadd.f32 %v734, %v915
      %v917 = vpop.f32.mrf.mxu0
      %v918 = vpop.f32.mrf.mxu0
      %v919 = vadd.f32 %v735, %v918
      %v920 = vpop.f32.mrf.mxu0
      %921 = vmatprep.mubr.bf16.mxu0 0
      %922 = vmatmul.mubr.bf16.gmra.mxu0 %v787
      %v923 = vpop.f32.mrf.mxu0
      %v924 = vadd.f32 %v736, %v923
      %v925 = vpop.f32.mrf.mxu0
      %v926 = vpop.f32.mrf.mxu0
      %v927 = vadd.f32 %v737, %v926
      %v928 = vpop.f32.mrf.mxu0
      %929 = vmatprep.mubr.bf16.mxu0 0
      %930 = vmatmul.mubr.bf16.gmra.mxu0 %v790
      %v931 = vpop.f32.mrf.mxu0
      %v932 = vadd.f32 %v738, %v931
      %v933 = vpop.f32.mrf.mxu0
      %v934 = vpop.f32.mrf.mxu0
      %v935 = vadd.f32 %v739, %v934
      %v936 = vpop.f32.mrf.mxu0
      %937 = vmatprep.mubr.bf16.mxu0 0
      %938 = vmatmul.mubr.bf16.gmra.mxu0 %v793
      %v939 = vpop.f32.mrf.mxu0
      %v940 = vadd.f32 %v740, %v939
      %v941 = vpop.f32.mrf.mxu0
      %v942 = vpop.f32.mrf.mxu0
      %v943 = vadd.f32 %v741, %v942
      %v944 = vpop.f32.mrf.mxu0
      %945 = vmatprep.mubr.bf16.mxu0 0
      %946 = vmatmul.mubr.bf16.gmra.mxu0 %v796
      %v947 = vpop.f32.mrf.mxu0
      %v948 = vadd.f32 %v742, %v947
      %v949 = vpop.f32.mrf.mxu0
      %v950 = vpop.f32.mrf.mxu0
      %v951 = vadd.f32 %v743, %v950
      %v952 = vpop.f32.mrf.mxu0
      %953 = vmatprep.mubr.bf16.mxu0 0
      %954 = vmatmul.mubr.bf16.gmra.mxu0 %v799
      %v955 = vpop.f32.mrf.mxu0
      %v956 = vadd.f32 %v744, %v955
      %v957 = vpop.f32.mrf.mxu0
      %v958 = vpop.f32.mrf.mxu0
      %v959 = vadd.f32 %v745, %v958
      %v960 = vpop.f32.mrf.mxu0
      %961 = vdwg.mxu0
      %962 = vset.pattern.permute.xlu0 1
      %963 = vperm.xlu0 %962, %v499
      %v964 = vpop.permute.xlu0 %963
      %966 = vset.pattern.permute.xlu0 1
      %967 = vperm.xlu0 %966, %v500
      %v968 = vpop.permute.xlu0 %967
      %970 = vset.pattern.permute.xlu0 1
      %971 = vperm.xlu0 %970, %v501
      %v972 = vpop.permute.xlu0 %971
      %974 = vset.pattern.permute.xlu0 1
      %975 = vperm.xlu0 %974, %v502
      %v976 = vpop.permute.xlu0 %975
      %978 = vset.pattern.permute.xlu0 1
      %979 = vperm.xlu0 %978, %v503
      %v980 = vpop.permute.xlu0 %979
      %982 = vset.pattern.permute.xlu0 1
      %983 = vperm.xlu0 %982, %v504
      %v984 = vpop.permute.xlu0 %983
      %986 = vset.pattern.permute.xlu0 1
      %987 = vperm.xlu0 %986, %v505
      %v988 = vpop.permute.xlu0 %987
      %990 = vset.pattern.permute.xlu0 1
      %991 = vperm.xlu0 %990, %v506
      %v992 = vpop.permute.xlu0 %991
      %994 = vset.pattern.permute.xlu0 1
      %995 = vperm.xlu0 %994, %v507
      %v996 = vpop.permute.xlu0 %995
      %998 = vset.pattern.permute.xlu0 1
      %999 = vperm.xlu0 %998, %v508
      %v1000 = vpop.permute.xlu0 %999
      %1002 = vset.pattern.permute.xlu0 1
      %1003 = vperm.xlu0 %1002, %v509
      %v1004 = vpop.permute.xlu0 %1003
      %1006 = vset.pattern.permute.xlu0 1
      %1007 = vperm.xlu0 %1006, %v510
      %v1008 = vpop.permute.xlu0 %1007
      %1010 = vset.pattern.permute.xlu0 1
      %1011 = vperm.xlu0 %1010, %v511
      %v1012 = vpop.permute.xlu0 %1011
      %1014 = vset.pattern.permute.xlu0 1
      %1015 = vperm.xlu0 %1014, %v512
      %v1016 = vpop.permute.xlu0 %1015
      %1018 = vset.pattern.permute.xlu0 1
      %1019 = vperm.xlu0 %1018, %v513
      %v1020 = vpop.permute.xlu0 %1019
      %1022 = vset.pattern.permute.xlu0 1
      %1023 = vperm.xlu0 %1022, %v514
      %v1024 = vpop.permute.xlu0 %1023
      %1026 = vset.pattern.permute.xlu0 1
      %1027 = vperm.xlu0 %1026, %v515
      %v1028 = vpop.permute.xlu0 %1027
      %1030 = vset.pattern.permute.xlu0 1
      %1031 = vperm.xlu0 %1030, %v516
      %v1032 = vpop.permute.xlu0 %1031
      %1034 = vset.pattern.permute.xlu0 1
      %1035 = vperm.xlu0 %1034, %v517
      %v1036 = vpop.permute.xlu0 %1035
      %1038 = vset.pattern.permute.xlu0 1
      %1039 = vperm.xlu0 %1038, %v518
      %v1040 = vpop.permute.xlu0 %1039
      %1042 = vset.pattern.permute.xlu0 1
      %1043 = vperm.xlu0 %1042, %v519
      %v1044 = vpop.permute.xlu0 %1043
      %1046 = vset.pattern.permute.xlu0 1
      %1047 = vperm.xlu0 %1046, %v520
      %v1048 = vpop.permute.xlu0 %1047
      %1050 = vset.pattern.permute.xlu0 1
      %1051 = vperm.xlu0 %1050, %v521
      %v1052 = vpop.permute.xlu0 %1051
      %1054 = vset.pattern.permute.xlu0 1
      %1055 = vperm.xlu0 %1054, %v522
      %v1056 = vpop.permute.xlu0 %1055
      %1058 = vset.pattern.permute.xlu0 1
      %1059 = vperm.xlu0 %1058, %v523
      %v1060 = vpop.permute.xlu0 %1059
      %1062 = vset.pattern.permute.xlu0 1
      %1063 = vperm.xlu0 %1062, %v524
      %v1064 = vpop.permute.xlu0 %1063
      %1066 = vset.pattern.permute.xlu0 1
      %1067 = vperm.xlu0 %1066, %v525
      %v1068 = vpop.permute.xlu0 %1067
      %1070 = vset.pattern.permute.xlu0 1
      %1071 = vperm.xlu0 %1070, %v526
      %v1072 = vpop.permute.xlu0 %1071
      %1074 = vset.pattern.permute.xlu0 1
      %1075 = vperm.xlu0 %1074, %v527
      %v1076 = vpop.permute.xlu0 %1075
      %1078 = vset.pattern.permute.xlu0 1
      %1079 = vperm.xlu0 %1078, %v528
      %v1080 = vpop.permute.xlu0 %1079
      %1082 = vset.pattern.permute.xlu0 1
      %1083 = vperm.xlu0 %1082, %v529
      %v1084 = vpop.permute.xlu0 %1083
      %1086 = vset.pattern.permute.xlu0 1
      %1087 = vperm.xlu0 %1086, %v530
      %v1088 = vpop.permute.xlu0 %1087
      %v1090 = vlaneseq
      %v1091 = vshrl.u32 %v1090, 7
      %v1092 = vsub.s32 1, %v1091
      %v1093 = vrot.slane %v533, %v1092
      %v1094 = vmul.f32 %v964, %v1093
      %v1095 = vmul.f32 %v968, %v1093
      %v1096 = vmul.f32 %v972, %v1093
      %v1097 = vmul.f32 %v976, %v1093
      %v1098 = vmul.f32 %v980, %v1093
      %v1099 = vmul.f32 %v984, %v1093
      %v1100 = vmul.f32 %v988, %v1093
      %v1101 = vmul.f32 %v992, %v1093
      %v1102 = vmul.f32 %v996, %v1093
      %v1103 = vmul.f32 %v1000, %v1093
      %v1104 = vmul.f32 %v1004, %v1093
      %v1105 = vmul.f32 %v1008, %v1093
      %v1106 = vmul.f32 %v1012, %v1093
      %v1107 = vmul.f32 %v1016, %v1093
      %v1108 = vmul.f32 %v1020, %v1093
      %v1109 = vmul.f32 %v1024, %v1093
      %v1110 = vmul.f32 %v1028, %v1093
      %v1111 = vmul.f32 %v1032, %v1093
      %v1112 = vmul.f32 %v1036, %v1093
      %v1113 = vmul.f32 %v1040, %v1093
      %v1114 = vmul.f32 %v1044, %v1093
      %v1115 = vmul.f32 %v1048, %v1093
      %v1116 = vmul.f32 %v1052, %v1093
      %v1117 = vmul.f32 %v1056, %v1093
      %v1118 = vmul.f32 %v1060, %v1093
      %v1119 = vmul.f32 %v1064, %v1093
      %v1120 = vmul.f32 %v1068, %v1093
      %v1121 = vmul.f32 %v1072, %v1093
      %v1122 = vmul.f32 %v1076, %v1093
      %v1123 = vmul.f32 %v1080, %v1093
      %v1124 = vmul.f32 %v1084, %v1093
      %v1125 = vmul.f32 %v1088, %v1093
      %v1126 = vadd.f32 %v836, %v1094
      %v1127 = vadd.f32 %v839, %v1095
      %v1128 = vadd.f32 %v844, %v1096
      %v1129 = vadd.f32 %v847, %v1097
      %v1130 = vadd.f32 %v852, %v1098
      %v1131 = vadd.f32 %v855, %v1099
      %v1132 = vadd.f32 %v860, %v1100
      %v1133 = vadd.f32 %v863, %v1101
      %v1134 = vadd.f32 %v868, %v1102
      %v1135 = vadd.f32 %v871, %v1103
      %v1136 = vadd.f32 %v876, %v1104
      %v1137 = vadd.f32 %v879, %v1105
      %v1138 = vadd.f32 %v884, %v1106
      %v1139 = vadd.f32 %v887, %v1107
      %v1140 = vadd.f32 %v892, %v1108
      %v1141 = vadd.f32 %v895, %v1109
      %v1142 = vadd.f32 %v900, %v1110
      %v1143 = vadd.f32 %v903, %v1111
      %v1144 = vadd.f32 %v908, %v1112
      %v1145 = vadd.f32 %v911, %v1113
      %v1146 = vadd.f32 %v916, %v1114
      %v1147 = vadd.f32 %v919, %v1115
      %v1148 = vadd.f32 %v924, %v1116
      %v1149 = vadd.f32 %v927, %v1117
      %v1150 = vadd.f32 %v932, %v1118
      %v1151 = vadd.f32 %v935, %v1119
      %v1152 = vadd.f32 %v940, %v1120
      %v1153 = vadd.f32 %v943, %v1121
      %v1154 = vadd.f32 %v948, %v1122
      %v1155 = vadd.f32 %v951, %v1123
      %v1156 = vadd.f32 %v956, %v1124
      %v1157 = vadd.f32 %v959, %v1125
      %v1158 = vld [vmem:[%s4] sm:$0x1]
      %v1160 = vlaneseq
      %v1161 = vshrl.u32 %v1160, 7
      %v1162 = vsub.s32 0, %v1161
      %v1163 = vrot.slane %v1158, %v1162
      %v1165 = vadd.f32 %v1126, %v1163
      %v1166 = vadd.f32 %v1127, %v1163
      %v1167 = vadd.f32 %v1128, %v1163
      %v1168 = vadd.f32 %v1129, %v1163
      %v1169 = vadd.f32 %v1130, %v1163
      %v1170 = vadd.f32 %v1131, %v1163
      %v1171 = vadd.f32 %v1132, %v1163
      %v1172 = vadd.f32 %v1133, %v1163
      %v1173 = vadd.f32 %v1134, %v1163
      %v1174 = vadd.f32 %v1135, %v1163
      %v1175 = vadd.f32 %v1136, %v1163
      %v1176 = vadd.f32 %v1137, %v1163
      %v1177 = vadd.f32 %v1138, %v1163
      %v1178 = vadd.f32 %v1139, %v1163
      %v1179 = vadd.f32 %v1140, %v1163
      %v1180 = vadd.f32 %v1141, %v1163
      %v1181 = vadd.f32 %v1142, %v1163
      %v1182 = vadd.f32 %v1143, %v1163
      %v1183 = vadd.f32 %v1144, %v1163
      %v1184 = vadd.f32 %v1145, %v1163
      %v1185 = vadd.f32 %v1146, %v1163
      %v1186 = vadd.f32 %v1147, %v1163
      %v1187 = vadd.f32 %v1148, %v1163
      %v1188 = vadd.f32 %v1149, %v1163
      %v1189 = vadd.f32 %v1150, %v1163
      %v1190 = vadd.f32 %v1151, %v1163
      %v1191 = vadd.f32 %v1152, %v1163
      %v1192 = vadd.f32 %v1153, %v1163
      %v1193 = vadd.f32 %v1154, %v1163
      %v1194 = vadd.f32 %v1155, %v1163
      %v1195 = vadd.f32 %v1156, %v1163
      %v1196 = vadd.f32 %v1157, %v1163
      %vm1197 = vcmp.gt.f32.partialorder %v1165, 0.0
      %vm1198 = vcmp.gt.f32.partialorder %v1166, 0.0
      %vm1199 = vcmp.gt.f32.partialorder %v1167, 0.0
      %vm1200 = vcmp.gt.f32.partialorder %v1168, 0.0
      %vm1201 = vcmp.gt.f32.partialorder %v1169, 0.0
      %vm1202 = vcmp.gt.f32.partialorder %v1170, 0.0
      %vm1203 = vcmp.gt.f32.partialorder %v1171, 0.0
      %vm1204 = vcmp.gt.f32.partialorder %v1172, 0.0
      %vm1205 = vcmp.gt.f32.partialorder %v1173, 0.0
      %vm1206 = vcmp.gt.f32.partialorder %v1174, 0.0
      %vm1207 = vcmp.gt.f32.partialorder %v1175, 0.0
      %vm1208 = vcmp.gt.f32.partialorder %v1176, 0.0
      %vm1209 = vcmp.gt.f32.partialorder %v1177, 0.0
      %vm1210 = vcmp.gt.f32.partialorder %v1178, 0.0
      %vm1211 = vcmp.gt.f32.partialorder %v1179, 0.0
      %vm1212 = vcmp.gt.f32.partialorder %v1180, 0.0
      %vm1213 = vcmp.gt.f32.partialorder %v1181, 0.0
      %vm1214 = vcmp.gt.f32.partialorder %v1182, 0.0
      %vm1215 = vcmp.gt.f32.partialorder %v1183, 0.0
      %vm1216 = vcmp.gt.f32.partialorder %v1184, 0.0
      %vm1217 = vcmp.gt.f32.partialorder %v1185, 0.0
      %vm1218 = vcmp.gt.f32.partialorder %v1186, 0.0
      %vm1219 = vcmp.gt.f32.partialorder %v1187, 0.0
      %vm1220 = vcmp.gt.f32.partialorder %v1188, 0.0
      %vm1221 = vcmp.gt.f32.partialorder %v1189, 0.0
      %vm1222 = vcmp.gt.f32.partialorder %v1190, 0.0
      %vm1223 = vcmp.gt.f32.partialorder %v1191, 0.0
      %vm1224 = vcmp.gt.f32.partialorder %v1192, 0.0
      %vm1225 = vcmp.gt.f32.partialorder %v1193, 0.0
      %vm1226 = vcmp.gt.f32.partialorder %v1194, 0.0
      %vm1227 = vcmp.gt.f32.partialorder %v1195, 0.0
      %vm1228 = vcmp.gt.f32.partialorder %v1196, 0.0
      %v1229 = vmul.f32 %v1165, 0.01
      %v1230 = vmul.f32 %v1166, 0.01
      %v1231 = vmul.f32 %v1167, 0.01
      %v1232 = vmul.f32 %v1168, 0.01
      %v1233 = vmul.f32 %v1169, 0.01
      %v1234 = vmul.f32 %v1170, 0.01
      %v1235 = vmul.f32 %v1171, 0.01
      %v1236 = vmul.f32 %v1172, 0.01
      %v1237 = vmul.f32 %v1173, 0.01
      %v1238 = vmul.f32 %v1174, 0.01
      %v1239 = vmul.f32 %v1175, 0.01
      %v1240 = vmul.f32 %v1176, 0.01
      %v1241 = vmul.f32 %v1177, 0.01
      %v1242 = vmul.f32 %v1178, 0.01
      %v1243 = vmul.f32 %v1179, 0.01
      %v1244 = vmul.f32 %v1180, 0.01
      %v1245 = vmul.f32 %v1181, 0.01
      %v1246 = vmul.f32 %v1182, 0.01
      %v1247 = vmul.f32 %v1183, 0.01
      %v1248 = vmul.f32 %v1184, 0.01
      %v1249 = vmul.f32 %v1185, 0.01
      %v1250 = vmul.f32 %v1186, 0.01
      %v1251 = vmul.f32 %v1187, 0.01
      %v1252 = vmul.f32 %v1188, 0.01
      %v1253 = vmul.f32 %v1189, 0.01
      %v1254 = vmul.f32 %v1190, 0.01
      %v1255 = vmul.f32 %v1191, 0.01
      %v1256 = vmul.f32 %v1192, 0.01
      %v1257 = vmul.f32 %v1193, 0.01
      %v1258 = vmul.f32 %v1194, 0.01
      %v1259 = vmul.f32 %v1195, 0.01
      %v1260 = vmul.f32 %v1196, 0.01
      %v1261 = vsel %vm1197, %v1165, %v1229
      %v1262 = vsel %vm1198, %v1166, %v1230
      %v1263 = vsel %vm1199, %v1167, %v1231
      %v1264 = vsel %vm1200, %v1168, %v1232
      %v1265 = vsel %vm1201, %v1169, %v1233
      %v1266 = vsel %vm1202, %v1170, %v1234
      %v1267 = vsel %vm1203, %v1171, %v1235
      %v1268 = vsel %vm1204, %v1172, %v1236
      %v1269 = vsel %vm1205, %v1173, %v1237
      %v1270 = vsel %vm1206, %v1174, %v1238
      %v1271 = vsel %vm1207, %v1175, %v1239
      %v1272 = vsel %vm1208, %v1176, %v1240
      %v1273 = vsel %vm1209, %v1177, %v1241
      %v1274 = vsel %vm1210, %v1178, %v1242
      %v1275 = vsel %vm1211, %v1179, %v1243
      %v1276 = vsel %vm1212, %v1180, %v1244
      %v1277 = vsel %vm1213, %v1181, %v1245
      %v1278 = vsel %vm1214, %v1182, %v1246
      %v1279 = vsel %vm1215, %v1183, %v1247
      %v1280 = vsel %vm1216, %v1184, %v1248
      %v1281 = vsel %vm1217, %v1185, %v1249
      %v1282 = vsel %vm1218, %v1186, %v1250
      %v1283 = vsel %vm1219, %v1187, %v1251
      %v1284 = vsel %vm1220, %v1188, %v1252
      %v1285 = vsel %vm1221, %v1189, %v1253
      %v1286 = vsel %vm1222, %v1190, %v1254
      %v1287 = vsel %vm1223, %v1191, %v1255
      %v1288 = vsel %vm1224, %v1192, %v1256
      %v1289 = vsel %vm1225, %v1193, %v1257
      %v1290 = vsel %vm1226, %v1194, %v1258
      %v1291 = vsel %vm1227, %v1195, %v1259
      %v1292 = vsel %vm1228, %v1196, %v1260
      %v1293 = vld [vmem:[%s5] sm:$0xf]
      %v1294 = vld [vmem:[%s5 + $0x4] sm:$0xf]
      %v1295 = vld [vmem:[%s5 + $0x8] sm:$0xf]
      %v1296 = vld [vmem:[%s5 + $0xc] sm:$0xf]
      %v1297 = vld [vmem:[%s6] sm:$0x1]
      %v1298 = vpack.c.bf16 %v1262, %v1261
      %v1299 = vpack.c.bf16 %v1264, %v1263
      %v1300 = vpack.c.bf16 %v1266, %v1265
      %v1301 = vpack.c.bf16 %v1268, %v1267
      %v1302 = vpack.c.bf16 %v1270, %v1269
      %v1303 = vpack.c.bf16 %v1272, %v1271
      %v1304 = vpack.c.bf16 %v1274, %v1273
      %v1305 = vpack.c.bf16 %v1276, %v1275
      %v1306 = vpack.c.bf16 %v1278, %v1277
      %v1307 = vpack.c.bf16 %v1280, %v1279
      %v1308 = vpack.c.bf16 %v1282, %v1281
      %v1309 = vpack.c.bf16 %v1284, %v1283
      %v1310 = vpack.c.bf16 %v1286, %v1285
      %v1311 = vpack.c.bf16 %v1288, %v1287
      %v1312 = vpack.c.bf16 %v1290, %v1289
      %v1313 = vpack.c.bf16 %v1292, %v1291
      %v1315 = vlaneseq
      %v1316 = vshrl.u32 %v1315, 7
      %v1317 = vsub.s32 0, %v1316
      %v1318 = vrot.slane %v1297, %v1317
      %v1324 = vunpack.c.l.b16 %v1293
      %v1325 = vunpack.c.l.b16 %v1294
      %v1326 = vunpack.c.l.b16 %v1295
      %v1327 = vunpack.c.l.b16 %v1296
      %v1328 = vpack.c.b16 %v1325, %v1324
      %v1329 = vpack.c.b16 %v1327, %v1326
      %vm1332 = vcmask 261120
      %v1334 = vsel %vm1332, %v1298, 0
      %v1337 = vsel %vm1332, %v1299, 0
      %v1340 = vsel %vm1332, %v1300, 0
      %v1343 = vsel %vm1332, %v1301, 0
      %v1346 = vsel %vm1332, %v1302, 0
      %v1349 = vsel %vm1332, %v1303, 0
      %v1352 = vsel %vm1332, %v1304, 0
      %v1355 = vsel %vm1332, %v1305, 0
      %v1358 = vsel %vm1332, %v1306, 0
      %v1361 = vsel %vm1332, %v1307, 0
      %v1364 = vsel %vm1332, %v1308, 0
      %v1367 = vsel %vm1332, %v1309, 0
      %v1370 = vsel %vm1332, %v1310, 0
      %v1373 = vsel %vm1332, %v1311, 0
      %v1376 = vsel %vm1332, %v1312, 0
      %v1379 = vsel %vm1332, %v1313, 0
      %1381 = vmatprep.subr.bf16.mxu0 0
      %1382 = vmatpush1.bf16.msra.mxu0 0
      %1383 = vmatprep.subr.bf16.mxu0 0
      %1384 = vmatpush1.bf16.msra.mxu0 0
      %1385 = vmatprep.subr.bf16.mxu0 0
      %1386 = vmatpush1.bf16.msra.mxu0 0
      %1387 = vmatprep.subr.bf16.mxu0 0
      %1388 = vmatpush1.bf16.msra.mxu0 0
      %1389 = vmatprep.subr.bf16.mxu0 0
      %1390 = vmatpush1.bf16.msra.mxu0 0
      %1391 = vmatprep.subr.bf16.mxu0 0
      %1392 = vmatpush1.bf16.msra.mxu0 0
      %1393 = vmatprep.subr.bf16.mxu0 0
      %1394 = vmatpush1.bf16.msra.mxu0 %v1329
      %1395 = vmatprep.subr.bf16.mxu0 0
      %1396 = vmatpush1.bf16.msra.mxu0 %v1328
      %1397 = vmatprep.subr.bf16.mxu0 0
      %1398 = vmatpush2.bf16.msra.mxu0 0
      %1399 = vmatprep.subr.bf16.mxu0 0
      %1400 = vmatpush2.bf16.msra.mxu0 0
      %1401 = vmatprep.subr.bf16.mxu0 0
      %1402 = vmatpush2.bf16.msra.mxu0 0
      %1403 = vmatprep.subr.bf16.mxu0 0
      %1404 = vmatpush2.bf16.msra.mxu0 0
      %1405 = vmatprep.subr.bf16.mxu0 0
      %1406 = vmatpush2.bf16.msra.mxu0 0
      %1407 = vmatprep.subr.bf16.mxu0 0
      %1408 = vmatpush2.bf16.msra.mxu0 0
      %1409 = vmatprep.subr.bf16.mxu0 0
      %1410 = vmatpush2.bf16.msra.mxu0 0
      %1411 = vmatprep.subr.bf16.mxu0 0
      %1412 = vmatpush2.bf16.msra.mxu0 0
      %1413 = vmatprep.mubr.bf16.mxu0 0
      %1414 = vmatmul.mubr.bf16.gmra.mxu0 %v1334
      %v1415 = vpop.f32.mrf.mxu0
      %v1416 = vadd.f32 %v1318, %v1415
      %v1417 = vpop.f32.mrf.mxu0
      %v1418 = vpop.f32.mrf.mxu0
      %v1419 = vadd.f32 %v1318, %v1418
      %v1420 = vpop.f32.mrf.mxu0
      %1421 = vmatprep.mubr.bf16.mxu0 0
      %1422 = vmatmul.mubr.bf16.gmra.mxu0 %v1337
      %v1423 = vpop.f32.mrf.mxu0
      %v1424 = vadd.f32 %v1318, %v1423
      %v1425 = vpop.f32.mrf.mxu0
      %v1426 = vpop.f32.mrf.mxu0
      %v1427 = vadd.f32 %v1318, %v1426
      %v1428 = vpop.f32.mrf.mxu0
      %1429 = vmatprep.mubr.bf16.mxu0 0
      %1430 = vmatmul.mubr.bf16.gmra.mxu0 %v1340
      %v1431 = vpop.f32.mrf.mxu0
      %v1432 = vadd.f32 %v1318, %v1431
      %v1433 = vpop.f32.mrf.mxu0
      %v1434 = vpop.f32.mrf.mxu0
      %v1435 = vadd.f32 %v1318, %v1434
      %v1436 = vpop.f32.mrf.mxu0
      %1437 = vmatprep.mubr.bf16.mxu0 0
      %1438 = vmatmul.mubr.bf16.gmra.mxu0 %v1343
      %v1439 = vpop.f32.mrf.mxu0
      %v1440 = vadd.f32 %v1318, %v1439
      %v1441 = vpop.f32.mrf.mxu0
      %v1442 = vpop.f32.mrf.mxu0
      %v1443 = vadd.f32 %v1318, %v1442
      %v1444 = vpop.f32.mrf.mxu0
      %1445 = vmatprep.mubr.bf16.mxu0 0
      %1446 = vmatmul.mubr.bf16.gmra.mxu0 %v1346
      %v1447 = vpop.f32.mrf.mxu0
      %v1448 = vadd.f32 %v1318, %v1447
      %v1449 = vpop.f32.mrf.mxu0
      %v1450 = vpop.f32.mrf.mxu0
      %v1451 = vadd.f32 %v1318, %v1450
      %v1452 = vpop.f32.mrf.mxu0
      %1453 = vmatprep.mubr.bf16.mxu0 0
      %1454 = vmatmul.mubr.bf16.gmra.mxu0 %v1349
      %v1455 = vpop.f32.mrf.mxu0
      %v1456 = vadd.f32 %v1318, %v1455
      %v1457 = vpop.f32.mrf.mxu0
      %v1458 = vpop.f32.mrf.mxu0
      %v1459 = vadd.f32 %v1318, %v1458
      %v1460 = vpop.f32.mrf.mxu0
      %1461 = vmatprep.mubr.bf16.mxu0 0
      %1462 = vmatmul.mubr.bf16.gmra.mxu0 %v1352
      %v1463 = vpop.f32.mrf.mxu0
      %v1464 = vadd.f32 %v1318, %v1463
      %v1465 = vpop.f32.mrf.mxu0
      %v1466 = vpop.f32.mrf.mxu0
      %v1467 = vadd.f32 %v1318, %v1466
      %v1468 = vpop.f32.mrf.mxu0
      %1469 = vmatprep.mubr.bf16.mxu0 0
      %1470 = vmatmul.mubr.bf16.gmra.mxu0 %v1355
      %v1471 = vpop.f32.mrf.mxu0
      %v1472 = vadd.f32 %v1318, %v1471
      %v1473 = vpop.f32.mrf.mxu0
      %v1474 = vpop.f32.mrf.mxu0
      %v1475 = vadd.f32 %v1318, %v1474
      %v1476 = vpop.f32.mrf.mxu0
      %1477 = vmatprep.mubr.bf16.mxu0 0
      %1478 = vmatmul.mubr.bf16.gmra.mxu0 %v1358
      %v1479 = vpop.f32.mrf.mxu0
      %v1480 = vadd.f32 %v1318, %v1479
      %v1481 = vpop.f32.mrf.mxu0
      %v1482 = vpop.f32.mrf.mxu0
      %v1483 = vadd.f32 %v1318, %v1482
      %v1484 = vpop.f32.mrf.mxu0
      %1485 = vmatprep.mubr.bf16.mxu0 0
      %1486 = vmatmul.mubr.bf16.gmra.mxu0 %v1361
      %v1487 = vpop.f32.mrf.mxu0
      %v1488 = vadd.f32 %v1318, %v1487
      %v1489 = vpop.f32.mrf.mxu0
      %v1490 = vpop.f32.mrf.mxu0
      %v1491 = vadd.f32 %v1318, %v1490
      %v1492 = vpop.f32.mrf.mxu0
      %1493 = vmatprep.mubr.bf16.mxu0 0
      %1494 = vmatmul.mubr.bf16.gmra.mxu0 %v1364
      %v1495 = vpop.f32.mrf.mxu0
      %v1496 = vadd.f32 %v1318, %v1495
      %v1497 = vpop.f32.mrf.mxu0
      %v1498 = vpop.f32.mrf.mxu0
      %v1499 = vadd.f32 %v1318, %v1498
      %v1500 = vpop.f32.mrf.mxu0
      %1501 = vmatprep.mubr.bf16.mxu0 0
      %1502 = vmatmul.mubr.bf16.gmra.mxu0 %v1367
      %v1503 = vpop.f32.mrf.mxu0
      %v1504 = vadd.f32 %v1318, %v1503
      %v1505 = vpop.f32.mrf.mxu0
      %v1506 = vpop.f32.mrf.mxu0
      %v1507 = vadd.f32 %v1318, %v1506
      %v1508 = vpop.f32.mrf.mxu0
      %1509 = vmatprep.mubr.bf16.mxu0 0
      %1510 = vmatmul.mubr.bf16.gmra.mxu0 %v1370
      %v1511 = vpop.f32.mrf.mxu0
      %v1512 = vadd.f32 %v1318, %v1511
      %v1513 = vpop.f32.mrf.mxu0
      %v1514 = vpop.f32.mrf.mxu0
      %v1515 = vadd.f32 %v1318, %v1514
      %v1516 = vpop.f32.mrf.mxu0
      %1517 = vmatprep.mubr.bf16.mxu0 0
      %1518 = vmatmul.mubr.bf16.gmra.mxu0 %v1373
      %v1519 = vpop.f32.mrf.mxu0
      %v1520 = vadd.f32 %v1318, %v1519
      %v1521 = vpop.f32.mrf.mxu0
      %v1522 = vpop.f32.mrf.mxu0
      %v1523 = vadd.f32 %v1318, %v1522
      %v1524 = vpop.f32.mrf.mxu0
      %1525 = vmatprep.mubr.bf16.mxu0 0
      %1526 = vmatmul.mubr.bf16.gmra.mxu0 %v1376
      %v1527 = vpop.f32.mrf.mxu0
      %v1528 = vadd.f32 %v1318, %v1527
      %v1529 = vpop.f32.mrf.mxu0
      %v1530 = vpop.f32.mrf.mxu0
      %v1531 = vadd.f32 %v1318, %v1530
      %v1532 = vpop.f32.mrf.mxu0
      %1533 = vmatprep.mubr.bf16.mxu0 0
      %1534 = vmatmul.mubr.bf16.gmra.mxu0 %v1379
      %v1535 = vpop.f32.mrf.mxu0
      %v1536 = vadd.f32 %v1318, %v1535
      %v1537 = vpop.f32.mrf.mxu0
      %v1538 = vpop.f32.mrf.mxu0
      %v1539 = vadd.f32 %v1318, %v1538
      %v1540 = vpop.f32.mrf.mxu0
      %1541 = vdwg.mxu0
      %vm1542 = vcmp.gt.f32.partialorder %v1416, 0.0
      %vm1543 = vcmp.gt.f32.partialorder %v1419, 0.0
      %vm1544 = vcmp.gt.f32.partialorder %v1424, 0.0
      %vm1545 = vcmp.gt.f32.partialorder %v1427, 0.0
      %vm1546 = vcmp.gt.f32.partialorder %v1432, 0.0
      %vm1547 = vcmp.gt.f32.partialorder %v1435, 0.0
      %vm1548 = vcmp.gt.f32.partialorder %v1440, 0.0
      %vm1549 = vcmp.gt.f32.partialorder %v1443, 0.0
      %vm1550 = vcmp.gt.f32.partialorder %v1448, 0.0
      %vm1551 = vcmp.gt.f32.partialorder %v1451, 0.0
      %vm1552 = vcmp.gt.f32.partialorder %v1456, 0.0
      %vm1553 = vcmp.gt.f32.partialorder %v1459, 0.0
      %vm1554 = vcmp.gt.f32.partialorder %v1464, 0.0
      %vm1555 = vcmp.gt.f32.partialorder %v1467, 0.0
      %vm1556 = vcmp.gt.f32.partialorder %v1472, 0.0
      %vm1557 = vcmp.gt.f32.partialorder %v1475, 0.0
      %vm1558 = vcmp.gt.f32.partialorder %v1480, 0.0
      %vm1559 = vcmp.gt.f32.partialorder %v1483, 0.0
      %vm1560 = vcmp.gt.f32.partialorder %v1488, 0.0
      %vm1561 = vcmp.gt.f32.partialorder %v1491, 0.0
      %vm1562 = vcmp.gt.f32.partialorder %v1496, 0.0
      %vm1563 = vcmp.gt.f32.partialorder %v1499, 0.0
      %vm1564 = vcmp.gt.f32.partialorder %v1504, 0.0
      %vm1565 = vcmp.gt.f32.partialorder %v1507, 0.0
      %vm1566 = vcmp.gt.f32.partialorder %v1512, 0.0
      %vm1567 = vcmp.gt.f32.partialorder %v1515, 0.0
      %vm1568 = vcmp.gt.f32.partialorder %v1520, 0.0
      %vm1569 = vcmp.gt.f32.partialorder %v1523, 0.0
      %vm1570 = vcmp.gt.f32.partialorder %v1528, 0.0
      %vm1571 = vcmp.gt.f32.partialorder %v1531, 0.0
      %vm1572 = vcmp.gt.f32.partialorder %v1536, 0.0
      %vm1573 = vcmp.gt.f32.partialorder %v1539, 0.0
      %v1574 = vmul.f32 %v1416, 0.01
      %v1575 = vmul.f32 %v1419, 0.01
      %v1576 = vmul.f32 %v1424, 0.01
      %v1577 = vmul.f32 %v1427, 0.01
      %v1578 = vmul.f32 %v1432, 0.01
      %v1579 = vmul.f32 %v1435, 0.01
      %v1580 = vmul.f32 %v1440, 0.01
      %v1581 = vmul.f32 %v1443, 0.01
      %v1582 = vmul.f32 %v1448, 0.01
      %v1583 = vmul.f32 %v1451, 0.01
      %v1584 = vmul.f32 %v1456, 0.01
      %v1585 = vmul.f32 %v1459, 0.01
      %v1586 = vmul.f32 %v1464, 0.01
      %v1587 = vmul.f32 %v1467, 0.01
      %v1588 = vmul.f32 %v1472, 0.01
      %v1589 = vmul.f32 %v1475, 0.01
      %v1590 = vmul.f32 %v1480, 0.01
      %v1591 = vmul.f32 %v1483, 0.01
      %v1592 = vmul.f32 %v1488, 0.01
      %v1593 = vmul.f32 %v1491, 0.01
      %v1594 = vmul.f32 %v1496, 0.01
      %v1595 = vmul.f32 %v1499, 0.01
      %v1596 = vmul.f32 %v1504, 0.01
      %v1597 = vmul.f32 %v1507, 0.01
      %v1598 = vmul.f32 %v1512, 0.01
      %v1599 = vmul.f32 %v1515, 0.01
      %v1600 = vmul.f32 %v1520, 0.01
      %v1601 = vmul.f32 %v1523, 0.01
      %v1602 = vmul.f32 %v1528, 0.01
      %v1603 = vmul.f32 %v1531, 0.01
      %v1604 = vmul.f32 %v1536, 0.01
      %v1605 = vmul.f32 %v1539, 0.01
      %v1606 = vsel %vm1542, %v1416, %v1574
      %v1607 = vsel %vm1543, %v1419, %v1575
      %v1608 = vsel %vm1544, %v1424, %v1576
      %v1609 = vsel %vm1545, %v1427, %v1577
      %v1610 = vsel %vm1546, %v1432, %v1578
      %v1611 = vsel %vm1547, %v1435, %v1579
      %v1612 = vsel %vm1548, %v1440, %v1580
      %v1613 = vsel %vm1549, %v1443, %v1581
      %v1614 = vsel %vm1550, %v1448, %v1582
      %v1615 = vsel %vm1551, %v1451, %v1583
      %v1616 = vsel %vm1552, %v1456, %v1584
      %v1617 = vsel %vm1553, %v1459, %v1585
      %v1618 = vsel %vm1554, %v1464, %v1586
      %v1619 = vsel %vm1555, %v1467, %v1587
      %v1620 = vsel %vm1556, %v1472, %v1588
      %v1621 = vsel %vm1557, %v1475, %v1589
      %v1622 = vsel %vm1558, %v1480, %v1590
      %v1623 = vsel %vm1559, %v1483, %v1591
      %v1624 = vsel %vm1560, %v1488, %v1592
      %v1625 = vsel %vm1561, %v1491, %v1593
      %v1626 = vsel %vm1562, %v1496, %v1594
      %v1627 = vsel %vm1563, %v1499, %v1595
      %v1628 = vsel %vm1564, %v1504, %v1596
      %v1629 = vsel %vm1565, %v1507, %v1597
      %v1630 = vsel %vm1566, %v1512, %v1598
      %v1631 = vsel %vm1567, %v1515, %v1599
      %v1632 = vsel %vm1568, %v1520, %v1600
      %v1633 = vsel %vm1569, %v1523, %v1601
      %v1634 = vsel %vm1570, %v1528, %v1602
      %v1635 = vsel %vm1571, %v1531, %v1603
      %v1636 = vsel %vm1572, %v1536, %v1604
      %v1637 = vsel %vm1573, %v1539, %v1605
      %v1638 = vld [vmem:[%s7] sm:$0xf]
      %v1639 = vld [vmem:[%s7 + $0x4] sm:$0xf]
      %v1640 = vld [vmem:[%s7 + $0x8] sm:$0xf]
      %v1641 = vld [vmem:[%s7 + $0xc] sm:$0xf]
      %v1642 = vld [vmem:[%s8] sm:$0x1]
      %v1643 = vpack.c.bf16 %v1607, %v1606
      %v1644 = vpack.c.bf16 %v1609, %v1608
      %v1645 = vpack.c.bf16 %v1611, %v1610
      %v1646 = vpack.c.bf16 %v1613, %v1612
      %v1647 = vpack.c.bf16 %v1615, %v1614
      %v1648 = vpack.c.bf16 %v1617, %v1616
      %v1649 = vpack.c.bf16 %v1619, %v1618
      %v1650 = vpack.c.bf16 %v1621, %v1620
      %v1651 = vpack.c.bf16 %v1623, %v1622
      %v1652 = vpack.c.bf16 %v1625, %v1624
      %v1653 = vpack.c.bf16 %v1627, %v1626
      %v1654 = vpack.c.bf16 %v1629, %v1628
      %v1655 = vpack.c.bf16 %v1631, %v1630
      %v1656 = vpack.c.bf16 %v1633, %v1632
      %v1657 = vpack.c.bf16 %v1635, %v1634
      %v1658 = vpack.c.bf16 %v1637, %v1636
      %v1660 = vlaneseq
      %v1661 = vshrl.u32 %v1660, 7
      %v1662 = vsub.s32 0, %v1661
      %v1663 = vrot.slane %v1642, %v1662
      %v1669 = vunpack.c.l.b16 %v1638
      %v1670 = vunpack.c.l.b16 %v1639
      %v1671 = vunpack.c.l.b16 %v1640
      %v1672 = vunpack.c.l.b16 %v1641
      %v1673 = vpack.c.b16 %v1670, %v1669
      %v1674 = vpack.c.b16 %v1672, %v1671
      %v1678 = vsel %vm1332, %v1643, 0
      %v1681 = vsel %vm1332, %v1644, 0
      %v1684 = vsel %vm1332, %v1645, 0
      %v1687 = vsel %vm1332, %v1646, 0
      %v1690 = vsel %vm1332, %v1647, 0
      %v1693 = vsel %vm1332, %v1648, 0
      %v1696 = vsel %vm1332, %v1649, 0
      %v1699 = vsel %vm1332, %v1650, 0
      %v1702 = vsel %vm1332, %v1651, 0
      %v1705 = vsel %vm1332, %v1652, 0
      %v1708 = vsel %vm1332, %v1653, 0
      %v1711 = vsel %vm1332, %v1654, 0
      %v1714 = vsel %vm1332, %v1655, 0
      %v1717 = vsel %vm1332, %v1656, 0
      %v1720 = vsel %vm1332, %v1657, 0
      %v1723 = vsel %vm1332, %v1658, 0
      %1725 = vmatprep.subr.bf16.mxu0 0
      %1726 = vmatpush1.bf16.msra.mxu0 0
      %1727 = vmatprep.subr.bf16.mxu0 0
      %1728 = vmatpush1.bf16.msra.mxu0 0
      %1729 = vmatprep.subr.bf16.mxu0 0
      %1730 = vmatpush1.bf16.msra.mxu0 0
      %1731 = vmatprep.subr.bf16.mxu0 0
      %1732 = vmatpush1.bf16.msra.mxu0 0
      %1733 = vmatprep.subr.bf16.mxu0 0
      %1734 = vmatpush1.bf16.msra.mxu0 0
      %1735 = vmatprep.subr.bf16.mxu0 0
      %1736 = vmatpush1.bf16.msra.mxu0 0
      %1737 = vmatprep.subr.bf16.mxu0 0
      %1738 = vmatpush1.bf16.msra.mxu0 %v1674
      %1739 = vmatprep.subr.bf16.mxu0 0
      %1740 = vmatpush1.bf16.msra.mxu0 %v1673
      %1741 = vmatprep.subr.bf16.mxu0 0
      %1742 = vmatpush2.bf16.msra.mxu0 0
      %1743 = vmatprep.subr.bf16.mxu0 0
      %1744 = vmatpush2.bf16.msra.mxu0 0
      %1745 = vmatprep.subr.bf16.mxu0 0
      %1746 = vmatpush2.bf16.msra.mxu0 0
      %1747 = vmatprep.subr.bf16.mxu0 0
      %1748 = vmatpush2.bf16.msra.mxu0 0
      %1749 = vmatprep.subr.bf16.mxu0 0
      %1750 = vmatpush2.bf16.msra.mxu0 0
      %1751 = vmatprep.subr.bf16.mxu0 0
      %1752 = vmatpush2.bf16.msra.mxu0 0
      %1753 = vmatprep.subr.bf16.mxu0 0
      %1754 = vmatpush2.bf16.msra.mxu0 0
      %1755 = vmatprep.subr.bf16.mxu0 0
      %1756 = vmatpush2.bf16.msra.mxu0 0
      %1757 = vmatprep.mubr.bf16.mxu0 0
      %1758 = vmatmul.mubr.bf16.gmra.mxu0 %v1678
      %v1759 = vpop.f32.mrf.mxu0
      %v1760 = vadd.f32 %v1663, %v1759
      %v1761 = vpop.f32.mrf.mxu0
      %v1762 = vpop.f32.mrf.mxu0
      %v1763 = vadd.f32 %v1663, %v1762
      %v1764 = vpop.f32.mrf.mxu0
      %1765 = vmatprep.mubr.bf16.mxu0 0
      %1766 = vmatmul.mubr.bf16.gmra.mxu0 %v1681
      %v1767 = vpop.f32.mrf.mxu0
      %v1768 = vadd.f32 %v1663, %v1767
      %v1769 = vpop.f32.mrf.mxu0
      %v1770 = vpop.f32.mrf.mxu0
      %v1771 = vadd.f32 %v1663, %v1770
      %v1772 = vpop.f32.mrf.mxu0
      %1773 = vmatprep.mubr.bf16.mxu0 0
      %1774 = vmatmul.mubr.bf16.gmra.mxu0 %v1684
      %v1775 = vpop.f32.mrf.mxu0
      %v1776 = vadd.f32 %v1663, %v1775
      %v1777 = vpop.f32.mrf.mxu0
      %v1778 = vpop.f32.mrf.mxu0
      %v1779 = vadd.f32 %v1663, %v1778
      %v1780 = vpop.f32.mrf.mxu0
      %1781 = vmatprep.mubr.bf16.mxu0 0
      %1782 = vmatmul.mubr.bf16.gmra.mxu0 %v1687
      %v1783 = vpop.f32.mrf.mxu0
      %v1784 = vadd.f32 %v1663, %v1783
      %v1785 = vpop.f32.mrf.mxu0
      %v1786 = vpop.f32.mrf.mxu0
      %v1787 = vadd.f32 %v1663, %v1786
      %v1788 = vpop.f32.mrf.mxu0
      %1789 = vmatprep.mubr.bf16.mxu0 0
      %1790 = vmatmul.mubr.bf16.gmra.mxu0 %v1690
      %v1791 = vpop.f32.mrf.mxu0
      %v1792 = vadd.f32 %v1663, %v1791
      %v1793 = vpop.f32.mrf.mxu0
      %v1794 = vpop.f32.mrf.mxu0
      %v1795 = vadd.f32 %v1663, %v1794
      %v1796 = vpop.f32.mrf.mxu0
      %1797 = vmatprep.mubr.bf16.mxu0 0
      %1798 = vmatmul.mubr.bf16.gmra.mxu0 %v1693
      %v1799 = vpop.f32.mrf.mxu0
      %v1800 = vadd.f32 %v1663, %v1799
      %v1801 = vpop.f32.mrf.mxu0
      %v1802 = vpop.f32.mrf.mxu0
      %v1803 = vadd.f32 %v1663, %v1802
      %v1804 = vpop.f32.mrf.mxu0
      %1805 = vmatprep.mubr.bf16.mxu0 0
      %1806 = vmatmul.mubr.bf16.gmra.mxu0 %v1696
      %v1807 = vpop.f32.mrf.mxu0
      %v1808 = vadd.f32 %v1663, %v1807
      %v1809 = vpop.f32.mrf.mxu0
      %v1810 = vpop.f32.mrf.mxu0
      %v1811 = vadd.f32 %v1663, %v1810
      %v1812 = vpop.f32.mrf.mxu0
      %1813 = vmatprep.mubr.bf16.mxu0 0
      %1814 = vmatmul.mubr.bf16.gmra.mxu0 %v1699
      %v1815 = vpop.f32.mrf.mxu0
      %v1816 = vadd.f32 %v1663, %v1815
      %v1817 = vpop.f32.mrf.mxu0
      %v1818 = vpop.f32.mrf.mxu0
      %v1819 = vadd.f32 %v1663, %v1818
      %v1820 = vpop.f32.mrf.mxu0
      %1821 = vmatprep.mubr.bf16.mxu0 0
      %1822 = vmatmul.mubr.bf16.gmra.mxu0 %v1702
      %v1823 = vpop.f32.mrf.mxu0
      %v1824 = vadd.f32 %v1663, %v1823
      %v1825 = vpop.f32.mrf.mxu0
      %v1826 = vpop.f32.mrf.mxu0
      %v1827 = vadd.f32 %v1663, %v1826
      %v1828 = vpop.f32.mrf.mxu0
      %1829 = vmatprep.mubr.bf16.mxu0 0
      %1830 = vmatmul.mubr.bf16.gmra.mxu0 %v1705
      %v1831 = vpop.f32.mrf.mxu0
      %v1832 = vadd.f32 %v1663, %v1831
      %v1833 = vpop.f32.mrf.mxu0
      %v1834 = vpop.f32.mrf.mxu0
      %v1835 = vadd.f32 %v1663, %v1834
      %v1836 = vpop.f32.mrf.mxu0
      %1837 = vmatprep.mubr.bf16.mxu0 0
      %1838 = vmatmul.mubr.bf16.gmra.mxu0 %v1708
      %v1839 = vpop.f32.mrf.mxu0
      %v1840 = vadd.f32 %v1663, %v1839
      %v1841 = vpop.f32.mrf.mxu0
      %v1842 = vpop.f32.mrf.mxu0
      %v1843 = vadd.f32 %v1663, %v1842
      %v1844 = vpop.f32.mrf.mxu0
      %1845 = vmatprep.mubr.bf16.mxu0 0
      %1846 = vmatmul.mubr.bf16.gmra.mxu0 %v1711
      %v1847 = vpop.f32.mrf.mxu0
      %v1848 = vadd.f32 %v1663, %v1847
      %v1849 = vpop.f32.mrf.mxu0
      %v1850 = vpop.f32.mrf.mxu0
      %v1851 = vadd.f32 %v1663, %v1850
      %v1852 = vpop.f32.mrf.mxu0
      %1853 = vmatprep.mubr.bf16.mxu0 0
      %1854 = vmatmul.mubr.bf16.gmra.mxu0 %v1714
      %v1855 = vpop.f32.mrf.mxu0
      %v1856 = vadd.f32 %v1663, %v1855
      %v1857 = vpop.f32.mrf.mxu0
      %v1858 = vpop.f32.mrf.mxu0
      %v1859 = vadd.f32 %v1663, %v1858
      %v1860 = vpop.f32.mrf.mxu0
      %1861 = vmatprep.mubr.bf16.mxu0 0
      %1862 = vmatmul.mubr.bf16.gmra.mxu0 %v1717
      %v1863 = vpop.f32.mrf.mxu0
      %v1864 = vadd.f32 %v1663, %v1863
      %v1865 = vpop.f32.mrf.mxu0
      %v1866 = vpop.f32.mrf.mxu0
      %v1867 = vadd.f32 %v1663, %v1866
      %v1868 = vpop.f32.mrf.mxu0
      %1869 = vmatprep.mubr.bf16.mxu0 0
      %1870 = vmatmul.mubr.bf16.gmra.mxu0 %v1720
      %v1871 = vpop.f32.mrf.mxu0
      %v1872 = vadd.f32 %v1663, %v1871
      %v1873 = vpop.f32.mrf.mxu0
      %v1874 = vpop.f32.mrf.mxu0
      %v1875 = vadd.f32 %v1663, %v1874
      %v1876 = vpop.f32.mrf.mxu0
      %1877 = vmatprep.mubr.bf16.mxu0 0
      %1878 = vmatmul.mubr.bf16.gmra.mxu0 %v1723
      %v1879 = vpop.f32.mrf.mxu0
      %v1880 = vadd.f32 %v1663, %v1879
      %v1881 = vpop.f32.mrf.mxu0
      %v1882 = vpop.f32.mrf.mxu0
      %v1883 = vadd.f32 %v1663, %v1882
      %v1884 = vpop.f32.mrf.mxu0
      %1885 = vdwg.mxu0
      %vm1886 = vcmp.gt.f32.partialorder %v1760, 0.0
      %vm1887 = vcmp.gt.f32.partialorder %v1763, 0.0
      %vm1888 = vcmp.gt.f32.partialorder %v1768, 0.0
      %vm1889 = vcmp.gt.f32.partialorder %v1771, 0.0
      %vm1890 = vcmp.gt.f32.partialorder %v1776, 0.0
      %vm1891 = vcmp.gt.f32.partialorder %v1779, 0.0
      %vm1892 = vcmp.gt.f32.partialorder %v1784, 0.0
      %vm1893 = vcmp.gt.f32.partialorder %v1787, 0.0
      %vm1894 = vcmp.gt.f32.partialorder %v1792, 0.0
      %vm1895 = vcmp.gt.f32.partialorder %v1795, 0.0
      %vm1896 = vcmp.gt.f32.partialorder %v1800, 0.0
      %vm1897 = vcmp.gt.f32.partialorder %v1803, 0.0
      %vm1898 = vcmp.gt.f32.partialorder %v1808, 0.0
      %vm1899 = vcmp.gt.f32.partialorder %v1811, 0.0
      %vm1900 = vcmp.gt.f32.partialorder %v1816, 0.0
      %vm1901 = vcmp.gt.f32.partialorder %v1819, 0.0
      %vm1902 = vcmp.gt.f32.partialorder %v1824, 0.0
      %vm1903 = vcmp.gt.f32.partialorder %v1827, 0.0
      %vm1904 = vcmp.gt.f32.partialorder %v1832, 0.0
      %vm1905 = vcmp.gt.f32.partialorder %v1835, 0.0
      %vm1906 = vcmp.gt.f32.partialorder %v1840, 0.0
      %vm1907 = vcmp.gt.f32.partialorder %v1843, 0.0
      %vm1908 = vcmp.gt.f32.partialorder %v1848, 0.0
      %vm1909 = vcmp.gt.f32.partialorder %v1851, 0.0
      %vm1910 = vcmp.gt.f32.partialorder %v1856, 0.0
      %vm1911 = vcmp.gt.f32.partialorder %v1859, 0.0
      %vm1912 = vcmp.gt.f32.partialorder %v1864, 0.0
      %vm1913 = vcmp.gt.f32.partialorder %v1867, 0.0
      %vm1914 = vcmp.gt.f32.partialorder %v1872, 0.0
      %vm1915 = vcmp.gt.f32.partialorder %v1875, 0.0
      %vm1916 = vcmp.gt.f32.partialorder %v1880, 0.0
      %vm1917 = vcmp.gt.f32.partialorder %v1883, 0.0
      %v1918 = vmul.f32 %v1760, 0.01
      %v1919 = vmul.f32 %v1763, 0.01
      %v1920 = vmul.f32 %v1768, 0.01
      %v1921 = vmul.f32 %v1771, 0.01
      %v1922 = vmul.f32 %v1776, 0.01
      %v1923 = vmul.f32 %v1779, 0.01
      %v1924 = vmul.f32 %v1784, 0.01
      %v1925 = vmul.f32 %v1787, 0.01
      %v1926 = vmul.f32 %v1792, 0.01
      %v1927 = vmul.f32 %v1795, 0.01
      %v1928 = vmul.f32 %v1800, 0.01
      %v1929 = vmul.f32 %v1803, 0.01
      %v1930 = vmul.f32 %v1808, 0.01
      %v1931 = vmul.f32 %v1811, 0.01
      %v1932 = vmul.f32 %v1816, 0.01
      %v1933 = vmul.f32 %v1819, 0.01
      %v1934 = vmul.f32 %v1824, 0.01
      %v1935 = vmul.f32 %v1827, 0.01
      %v1936 = vmul.f32 %v1832, 0.01
      %v1937 = vmul.f32 %v1835, 0.01
      %v1938 = vmul.f32 %v1840, 0.01
      %v1939 = vmul.f32 %v1843, 0.01
      %v1940 = vmul.f32 %v1848, 0.01
      %v1941 = vmul.f32 %v1851, 0.01
      %v1942 = vmul.f32 %v1856, 0.01
      %v1943 = vmul.f32 %v1859, 0.01
      %v1944 = vmul.f32 %v1864, 0.01
      %v1945 = vmul.f32 %v1867, 0.01
      %v1946 = vmul.f32 %v1872, 0.01
      %v1947 = vmul.f32 %v1875, 0.01
      %v1948 = vmul.f32 %v1880, 0.01
      %v1949 = vmul.f32 %v1883, 0.01
      %v1950 = vsel %vm1886, %v1760, %v1918
      %v1951 = vsel %vm1887, %v1763, %v1919
      %v1952 = vsel %vm1888, %v1768, %v1920
      %v1953 = vsel %vm1889, %v1771, %v1921
      %v1954 = vsel %vm1890, %v1776, %v1922
      %v1955 = vsel %vm1891, %v1779, %v1923
      %v1956 = vsel %vm1892, %v1784, %v1924
      %v1957 = vsel %vm1893, %v1787, %v1925
      %v1958 = vsel %vm1894, %v1792, %v1926
      %v1959 = vsel %vm1895, %v1795, %v1927
      %v1960 = vsel %vm1896, %v1800, %v1928
      %v1961 = vsel %vm1897, %v1803, %v1929
      %v1962 = vsel %vm1898, %v1808, %v1930
      %v1963 = vsel %vm1899, %v1811, %v1931
      %v1964 = vsel %vm1900, %v1816, %v1932
      %v1965 = vsel %vm1901, %v1819, %v1933
      %v1966 = vsel %vm1902, %v1824, %v1934
      %v1967 = vsel %vm1903, %v1827, %v1935
      %v1968 = vsel %vm1904, %v1832, %v1936
      %v1969 = vsel %vm1905, %v1835, %v1937
      %v1970 = vsel %vm1906, %v1840, %v1938
      %v1971 = vsel %vm1907, %v1843, %v1939
      %v1972 = vsel %vm1908, %v1848, %v1940
      %v1973 = vsel %vm1909, %v1851, %v1941
      %v1974 = vsel %vm1910, %v1856, %v1942
      %v1975 = vsel %vm1911, %v1859, %v1943
      %v1976 = vsel %vm1912, %v1864, %v1944
      %v1977 = vsel %vm1913, %v1867, %v1945
      %v1978 = vsel %vm1914, %v1872, %v1946
      %v1979 = vsel %vm1915, %v1875, %v1947
      %v1980 = vsel %vm1916, %v1880, %v1948
      %v1981 = vsel %vm1917, %v1883, %v1949
      %v1982 = vld [vmem:[%s9] sm:$0xf]
      %v1983 = vld [vmem:[%s9 + $0x4] sm:$0xf]
      %v1984 = vld [vmem:[%s9 + $0x8] sm:$0xf]
      %v1985 = vld [vmem:[%s9 + $0xc] sm:$0xf]
      %v1986 = vpack.c.bf16 %v1951, %v1950
      %v1987 = vpack.c.bf16 %v1953, %v1952
      %v1988 = vpack.c.bf16 %v1955, %v1954
      %v1989 = vpack.c.bf16 %v1957, %v1956
      %v1990 = vpack.c.bf16 %v1959, %v1958
      %v1991 = vpack.c.bf16 %v1961, %v1960
      %v1992 = vpack.c.bf16 %v1963, %v1962
      %v1993 = vpack.c.bf16 %v1965, %v1964
      %v1994 = vpack.c.bf16 %v1967, %v1966
      %v1995 = vpack.c.bf16 %v1969, %v1968
      %v1996 = vpack.c.bf16 %v1971, %v1970
      %v1997 = vpack.c.bf16 %v1973, %v1972
      %v1998 = vpack.c.bf16 %v1975, %v1974
      %v1999 = vpack.c.bf16 %v1977, %v1976
      %v2000 = vpack.c.bf16 %v1979, %v1978
      %v2001 = vpack.c.bf16 %v1981, %v1980
      %v2002 = vld [vmem:[%s10] sm:$0x1]
      %v2004 = vlaneseq
      %v2005 = vshrl.u32 %v2004, 7
      %v2006 = vsub.s32 0, %v2005
      %v2007 = vrot.slane %v2002, %v2006
      %v2013 = vunpack.c.l.b16 %v1982
      %v2014 = vunpack.c.l.b16 %v1983
      %v2015 = vunpack.c.l.b16 %v1984
      %v2016 = vunpack.c.l.b16 %v1985
      %v2017 = vpack.c.b16 %v2014, %v2013
      %v2018 = vpack.c.b16 %v2016, %v2015
      %v2022 = vsel %vm1332, %v1986, 0
      %v2025 = vsel %vm1332, %v1987, 0
      %v2028 = vsel %vm1332, %v1988, 0
      %v2031 = vsel %vm1332, %v1989, 0
      %v2034 = vsel %vm1332, %v1990, 0
      %v2037 = vsel %vm1332, %v1991, 0
      %v2040 = vsel %vm1332, %v1992, 0
      %v2043 = vsel %vm1332, %v1993, 0
      %v2046 = vsel %vm1332, %v1994, 0
      %v2049 = vsel %vm1332, %v1995, 0
      %v2052 = vsel %vm1332, %v1996, 0
      %v2055 = vsel %vm1332, %v1997, 0
      %v2058 = vsel %vm1332, %v1998, 0
      %v2061 = vsel %vm1332, %v1999, 0
      %v2064 = vsel %vm1332, %v2000, 0
      %v2067 = vsel %vm1332, %v2001, 0
      %2069 = vmatprep.subr.bf16.mxu0 0
      %2070 = vmatpush1.bf16.msra.mxu0 0
      %2071 = vmatprep.subr.bf16.mxu0 0
      %2072 = vmatpush1.bf16.msra.mxu0 0
      %2073 = vmatprep.subr.bf16.mxu0 0
      %2074 = vmatpush1.bf16.msra.mxu0 0
      %2075 = vmatprep.subr.bf16.mxu0 0
      %2076 = vmatpush1.bf16.msra.mxu0 0
      %2077 = vmatprep.subr.bf16.mxu0 0
      %2078 = vmatpush1.bf16.msra.mxu0 0
      %2079 = vmatprep.subr.bf16.mxu0 0
      %2080 = vmatpush1.bf16.msra.mxu0 0
      %2081 = vmatprep.subr.bf16.mxu0 0
      %2082 = vmatpush1.bf16.msra.mxu0 %v2018
      %2083 = vmatprep.subr.bf16.mxu0 0
      %2084 = vmatpush1.bf16.msra.mxu0 %v2017
      %2085 = vmatprep.subr.bf16.mxu0 0
      %2086 = vmatpush2.bf16.msra.mxu0 0
      %2087 = vmatprep.subr.bf16.mxu0 0
      %2088 = vmatpush2.bf16.msra.mxu0 0
      %2089 = vmatprep.subr.bf16.mxu0 0
      %2090 = vmatpush2.bf16.msra.mxu0 0
      %2091 = vmatprep.subr.bf16.mxu0 0
      %2092 = vmatpush2.bf16.msra.mxu0 0
      %2093 = vmatprep.subr.bf16.mxu0 0
      %2094 = vmatpush2.bf16.msra.mxu0 0
      %2095 = vmatprep.subr.bf16.mxu0 0
      %2096 = vmatpush2.bf16.msra.mxu0 0
      %2097 = vmatprep.subr.bf16.mxu0 0
      %2098 = vmatpush2.bf16.msra.mxu0 0
      %2099 = vmatprep.subr.bf16.mxu0 0
      %2100 = vmatpush2.bf16.msra.mxu0 0
      %2101 = vmatprep.mubr.bf16.mxu0 0
      %2102 = vmatmul.mubr.bf16.gmra.mxu0 %v2022
      %v2103 = vpop.f32.mrf.mxu0
      %v2104 = vadd.f32 %v2007, %v2103
      %v2105 = vpop.f32.mrf.mxu0
      %v2106 = vpop.f32.mrf.mxu0
      %v2107 = vadd.f32 %v2007, %v2106
      %v2108 = vpop.f32.mrf.mxu0
      %2109 = vmatprep.mubr.bf16.mxu0 0
      %2110 = vmatmul.mubr.bf16.gmra.mxu0 %v2025
      %v2111 = vpop.f32.mrf.mxu0
      %v2112 = vadd.f32 %v2007, %v2111
      %v2113 = vpop.f32.mrf.mxu0
      %v2114 = vpop.f32.mrf.mxu0
      %v2115 = vadd.f32 %v2007, %v2114
      %v2116 = vpop.f32.mrf.mxu0
      %2117 = vmatprep.mubr.bf16.mxu0 0
      %2118 = vmatmul.mubr.bf16.gmra.mxu0 %v2028
      %v2119 = vpop.f32.mrf.mxu0
      %v2120 = vadd.f32 %v2007, %v2119
      %v2121 = vpop.f32.mrf.mxu0
      %v2122 = vpop.f32.mrf.mxu0
      %v2123 = vadd.f32 %v2007, %v2122
      %v2124 = vpop.f32.mrf.mxu0
      %2125 = vmatprep.mubr.bf16.mxu0 0
      %2126 = vmatmul.mubr.bf16.gmra.mxu0 %v2031
      %v2127 = vpop.f32.mrf.mxu0
      %v2128 = vadd.f32 %v2007, %v2127
      %v2129 = vpop.f32.mrf.mxu0
      %v2130 = vpop.f32.mrf.mxu0
      %v2131 = vadd.f32 %v2007, %v2130
      %v2132 = vpop.f32.mrf.mxu0
      %2133 = vmatprep.mubr.bf16.mxu0 0
      %2134 = vmatmul.mubr.bf16.gmra.mxu0 %v2034
      %v2135 = vpop.f32.mrf.mxu0
      %v2136 = vadd.f32 %v2007, %v2135
      %v2137 = vpop.f32.mrf.mxu0
      %v2138 = vpop.f32.mrf.mxu0
      %v2139 = vadd.f32 %v2007, %v2138
      %v2140 = vpop.f32.mrf.mxu0
      %2141 = vmatprep.mubr.bf16.mxu0 0
      %2142 = vmatmul.mubr.bf16.gmra.mxu0 %v2037
      %v2143 = vpop.f32.mrf.mxu0
      %v2144 = vadd.f32 %v2007, %v2143
      %v2145 = vpop.f32.mrf.mxu0
      %v2146 = vpop.f32.mrf.mxu0
      %v2147 = vadd.f32 %v2007, %v2146
      %v2148 = vpop.f32.mrf.mxu0
      %2149 = vmatprep.mubr.bf16.mxu0 0
      %2150 = vmatmul.mubr.bf16.gmra.mxu0 %v2040
      %v2151 = vpop.f32.mrf.mxu0
      %v2152 = vadd.f32 %v2007, %v2151
      %v2153 = vpop.f32.mrf.mxu0
      %v2154 = vpop.f32.mrf.mxu0
      %v2155 = vadd.f32 %v2007, %v2154
      %v2156 = vpop.f32.mrf.mxu0
      %2157 = vmatprep.mubr.bf16.mxu0 0
      %2158 = vmatmul.mubr.bf16.gmra.mxu0 %v2043
      %v2159 = vpop.f32.mrf.mxu0
      %v2160 = vadd.f32 %v2007, %v2159
      %v2161 = vpop.f32.mrf.mxu0
      %v2162 = vpop.f32.mrf.mxu0
      %v2163 = vadd.f32 %v2007, %v2162
      %v2164 = vpop.f32.mrf.mxu0
      %2165 = vmatprep.mubr.bf16.mxu0 0
      %2166 = vmatmul.mubr.bf16.gmra.mxu0 %v2046
      %v2167 = vpop.f32.mrf.mxu0
      %v2168 = vadd.f32 %v2007, %v2167
      %v2169 = vpop.f32.mrf.mxu0
      %v2170 = vpop.f32.mrf.mxu0
      %v2171 = vadd.f32 %v2007, %v2170
      %v2172 = vpop.f32.mrf.mxu0
      %2173 = vmatprep.mubr.bf16.mxu0 0
      %2174 = vmatmul.mubr.bf16.gmra.mxu0 %v2049
      %v2175 = vpop.f32.mrf.mxu0
      %v2176 = vadd.f32 %v2007, %v2175
      %v2177 = vpop.f32.mrf.mxu0
      %v2178 = vpop.f32.mrf.mxu0
      %v2179 = vadd.f32 %v2007, %v2178
      %v2180 = vpop.f32.mrf.mxu0
      %2181 = vmatprep.mubr.bf16.mxu0 0
      %2182 = vmatmul.mubr.bf16.gmra.mxu0 %v2052
      %v2183 = vpop.f32.mrf.mxu0
      %v2184 = vadd.f32 %v2007, %v2183
      %v2185 = vpop.f32.mrf.mxu0
      %v2186 = vpop.f32.mrf.mxu0
      %v2187 = vadd.f32 %v2007, %v2186
      %v2188 = vpop.f32.mrf.mxu0
      %2189 = vmatprep.mubr.bf16.mxu0 0
      %2190 = vmatmul.mubr.bf16.gmra.mxu0 %v2055
      %v2191 = vpop.f32.mrf.mxu0
      %v2192 = vadd.f32 %v2007, %v2191
      %v2193 = vpop.f32.mrf.mxu0
      %v2194 = vpop.f32.mrf.mxu0
      %v2195 = vadd.f32 %v2007, %v2194
      %v2196 = vpop.f32.mrf.mxu0
      %2197 = vmatprep.mubr.bf16.mxu0 0
      %2198 = vmatmul.mubr.bf16.gmra.mxu0 %v2058
      %v2199 = vpop.f32.mrf.mxu0
      %v2200 = vadd.f32 %v2007, %v2199
      %v2201 = vpop.f32.mrf.mxu0
      %v2202 = vpop.f32.mrf.mxu0
      %v2203 = vadd.f32 %v2007, %v2202
      %v2204 = vpop.f32.mrf.mxu0
      %2205 = vmatprep.mubr.bf16.mxu0 0
      %2206 = vmatmul.mubr.bf16.gmra.mxu0 %v2061
      %v2207 = vpop.f32.mrf.mxu0
      %v2208 = vadd.f32 %v2007, %v2207
      %v2209 = vpop.f32.mrf.mxu0
      %v2210 = vpop.f32.mrf.mxu0
      %v2211 = vadd.f32 %v2007, %v2210
      %v2212 = vpop.f32.mrf.mxu0
      %2213 = vmatprep.mubr.bf16.mxu0 0
      %2214 = vmatmul.mubr.bf16.gmra.mxu0 %v2064
      %v2215 = vpop.f32.mrf.mxu0
      %v2216 = vadd.f32 %v2007, %v2215
      %v2217 = vpop.f32.mrf.mxu0
      %v2218 = vpop.f32.mrf.mxu0
      %v2219 = vadd.f32 %v2007, %v2218
      %v2220 = vpop.f32.mrf.mxu0
      %2221 = vmatprep.mubr.bf16.mxu0 0
      %2222 = vmatmul.mubr.bf16.gmra.mxu0 %v2067
      %v2223 = vpop.f32.mrf.mxu0
      %v2224 = vadd.f32 %v2007, %v2223
      %v2225 = vpop.f32.mrf.mxu0
      %v2226 = vpop.f32.mrf.mxu0
      %v2227 = vadd.f32 %v2007, %v2226
      %v2228 = vpop.f32.mrf.mxu0
      %2229 = vdwg.mxu0
      %vm2230 = vcmp.gt.f32.partialorder %v2104, 0.0
      %vm2231 = vcmp.gt.f32.partialorder %v2107, 0.0
      %vm2232 = vcmp.gt.f32.partialorder %v2112, 0.0
      %vm2233 = vcmp.gt.f32.partialorder %v2115, 0.0
      %vm2234 = vcmp.gt.f32.partialorder %v2120, 0.0
      %vm2235 = vcmp.gt.f32.partialorder %v2123, 0.0
      %vm2236 = vcmp.gt.f32.partialorder %v2128, 0.0
      %vm2237 = vcmp.gt.f32.partialorder %v2131, 0.0
      %vm2238 = vcmp.gt.f32.partialorder %v2136, 0.0
      %vm2239 = vcmp.gt.f32.partialorder %v2139, 0.0
      %vm2240 = vcmp.gt.f32.partialorder %v2144, 0.0
      %vm2241 = vcmp.gt.f32.partialorder %v2147, 0.0
      %vm2242 = vcmp.gt.f32.partialorder %v2152, 0.0
      %vm2243 = vcmp.gt.f32.partialorder %v2155, 0.0
      %vm2244 = vcmp.gt.f32.partialorder %v2160, 0.0
      %vm2245 = vcmp.gt.f32.partialorder %v2163, 0.0
      %vm2246 = vcmp.gt.f32.partialorder %v2168, 0.0
      %vm2247 = vcmp.gt.f32.partialorder %v2171, 0.0
      %vm2248 = vcmp.gt.f32.partialorder %v2176, 0.0
      %vm2249 = vcmp.gt.f32.partialorder %v2179, 0.0
      %vm2250 = vcmp.gt.f32.partialorder %v2184, 0.0
      %vm2251 = vcmp.gt.f32.partialorder %v2187, 0.0
      %vm2252 = vcmp.gt.f32.partialorder %v2192, 0.0
      %vm2253 = vcmp.gt.f32.partialorder %v2195, 0.0
      %vm2254 = vcmp.gt.f32.partialorder %v2200, 0.0
      %vm2255 = vcmp.gt.f32.partialorder %v2203, 0.0
      %vm2256 = vcmp.gt.f32.partialorder %v2208, 0.0
      %vm2257 = vcmp.gt.f32.partialorder %v2211, 0.0
      %vm2258 = vcmp.gt.f32.partialorder %v2216, 0.0
      %vm2259 = vcmp.gt.f32.partialorder %v2219, 0.0
      %vm2260 = vcmp.gt.f32.partialorder %v2224, 0.0
      %vm2261 = vcmp.gt.f32.partialorder %v2227, 0.0
      %v2262 = vmul.f32 %v2104, 0.01
      %v2263 = vmul.f32 %v2107, 0.01
      %v2264 = vmul.f32 %v2112, 0.01
      %v2265 = vmul.f32 %v2115, 0.01
      %v2266 = vmul.f32 %v2120, 0.01
      %v2267 = vmul.f32 %v2123, 0.01
      %v2268 = vmul.f32 %v2128, 0.01
      %v2269 = vmul.f32 %v2131, 0.01
      %v2270 = vmul.f32 %v2136, 0.01
      %v2271 = vmul.f32 %v2139, 0.01
      %v2272 = vmul.f32 %v2144, 0.01
      %v2273 = vmul.f32 %v2147, 0.01
      %v2274 = vmul.f32 %v2152, 0.01
      %v2275 = vmul.f32 %v2155, 0.01
      %v2276 = vmul.f32 %v2160, 0.01
      %v2277 = vmul.f32 %v2163, 0.01
      %v2278 = vmul.f32 %v2168, 0.01
      %v2279 = vmul.f32 %v2171, 0.01
      %v2280 = vmul.f32 %v2176, 0.01
      %v2281 = vmul.f32 %v2179, 0.01
      %v2282 = vmul.f32 %v2184, 0.01
      %v2283 = vmul.f32 %v2187, 0.01
      %v2284 = vmul.f32 %v2192, 0.01
      %v2285 = vmul.f32 %v2195, 0.01
      %v2286 = vmul.f32 %v2200, 0.01
      %v2287 = vmul.f32 %v2203, 0.01
      %v2288 = vmul.f32 %v2208, 0.01
      %v2289 = vmul.f32 %v2211, 0.01
      %v2290 = vmul.f32 %v2216, 0.01
      %v2291 = vmul.f32 %v2219, 0.01
      %v2292 = vmul.f32 %v2224, 0.01
      %v2293 = vmul.f32 %v2227, 0.01
      %v2294 = vsel %vm2230, %v2104, %v2262
      %v2295 = vsel %vm2231, %v2107, %v2263
      %v2296 = vsel %vm2232, %v2112, %v2264
      %v2297 = vsel %vm2233, %v2115, %v2265
      %v2298 = vsel %vm2234, %v2120, %v2266
      %v2299 = vsel %vm2235, %v2123, %v2267
      %v2300 = vsel %vm2236, %v2128, %v2268
      %v2301 = vsel %vm2237, %v2131, %v2269
      %v2302 = vsel %vm2238, %v2136, %v2270
      %v2303 = vsel %vm2239, %v2139, %v2271
      %v2304 = vsel %vm2240, %v2144, %v2272
      %v2305 = vsel %vm2241, %v2147, %v2273
      %v2306 = vsel %vm2242, %v2152, %v2274
      %v2307 = vsel %vm2243, %v2155, %v2275
      %v2308 = vsel %vm2244, %v2160, %v2276
      %v2309 = vsel %vm2245, %v2163, %v2277
      %v2310 = vsel %vm2246, %v2168, %v2278
      %v2311 = vsel %vm2247, %v2171, %v2279
      %v2312 = vsel %vm2248, %v2176, %v2280
      %v2313 = vsel %vm2249, %v2179, %v2281
      %v2314 = vsel %vm2250, %v2184, %v2282
      %v2315 = vsel %vm2251, %v2187, %v2283
      %v2316 = vsel %vm2252, %v2192, %v2284
      %v2317 = vsel %vm2253, %v2195, %v2285
      %v2318 = vsel %vm2254, %v2200, %v2286
      %v2319 = vsel %vm2255, %v2203, %v2287
      %v2320 = vsel %vm2256, %v2208, %v2288
      %v2321 = vsel %vm2257, %v2211, %v2289
      %v2322 = vsel %vm2258, %v2216, %v2290
      %v2323 = vsel %vm2259, %v2219, %v2291
      %v2324 = vsel %vm2260, %v2224, %v2292
      %v2325 = vsel %vm2261, %v2227, %v2293
      %v2326 = vld [vmem:[%s11] sm:$0x1]
      %v2328 = vlaneseq
      %v2329 = vshrl.u32 %v2328, 7
      %v2330 = vsub.s32 0, %v2329
      %v2331 = vrot.slane %v2326, %v2330
      %v2333 = vmul.f32 %v2294, %v2331
      %v2334 = vmul.f32 %v2295, %v2331
      %v2335 = vmul.f32 %v2296, %v2331
      %v2336 = vmul.f32 %v2297, %v2331
      %v2337 = vmul.f32 %v2298, %v2331
      %v2338 = vmul.f32 %v2299, %v2331
      %v2339 = vmul.f32 %v2300, %v2331
      %v2340 = vmul.f32 %v2301, %v2331
      %v2341 = vmul.f32 %v2302, %v2331
      %v2342 = vmul.f32 %v2303, %v2331
      %v2343 = vmul.f32 %v2304, %v2331
      %v2344 = vmul.f32 %v2305, %v2331
      %v2345 = vmul.f32 %v2306, %v2331
      %v2346 = vmul.f32 %v2307, %v2331
      %v2347 = vmul.f32 %v2308, %v2331
      %v2348 = vmul.f32 %v2309, %v2331
      %v2349 = vmul.f32 %v2310, %v2331
      %v2350 = vmul.f32 %v2311, %v2331
      %v2351 = vmul.f32 %v2312, %v2331
      %v2352 = vmul.f32 %v2313, %v2331
      %v2353 = vmul.f32 %v2314, %v2331
      %v2354 = vmul.f32 %v2315, %v2331
      %v2355 = vmul.f32 %v2316, %v2331
      %v2356 = vmul.f32 %v2317, %v2331
      %v2357 = vmul.f32 %v2318, %v2331
      %v2358 = vmul.f32 %v2319, %v2331
      %v2359 = vmul.f32 %v2320, %v2331
      %v2360 = vmul.f32 %v2321, %v2331
      %v2361 = vmul.f32 %v2322, %v2331
      %v2362 = vmul.f32 %v2323, %v2331
      %v2363 = vmul.f32 %v2324, %v2331
      %v2364 = vmul.f32 %v2325, %v2331
      %v2365 = vsel %vm1332, %v2333, 0.0
      %2366 = vadd.xlane.f32.xlu0 %v2365
      %v2367 = vpop.xlane.xlu0 %2366
      %v2368 = vsel %vm1332, %v2334, 0.0
      %2369 = vadd.xlane.f32.xlu0 %v2368
      %v2370 = vpop.xlane.xlu0 %2369
      %v2371 = vsel %vm1332, %v2335, 0.0
      %2372 = vadd.xlane.f32.xlu0 %v2371
      %v2373 = vpop.xlane.xlu0 %2372
      %v2374 = vsel %vm1332, %v2336, 0.0
      %2375 = vadd.xlane.f32.xlu0 %v2374
      %v2376 = vpop.xlane.xlu0 %2375
      %v2377 = vsel %vm1332, %v2337, 0.0
      %2378 = vadd.xlane.f32.xlu0 %v2377
      %v2379 = vpop.xlane.xlu0 %2378
      %v2380 = vsel %vm1332, %v2338, 0.0
      %2381 = vadd.xlane.f32.xlu0 %v2380
      %v2382 = vpop.xlane.xlu0 %2381
      %v2383 = vsel %vm1332, %v2339, 0.0
      %2384 = vadd.xlane.f32.xlu0 %v2383
      %v2385 = vpop.xlane.xlu0 %2384
      %v2386 = vsel %vm1332, %v2340, 0.0
      %2387 = vadd.xlane.f32.xlu0 %v2386
      %v2388 = vpop.xlane.xlu0 %2387
      %v2389 = vsel %vm1332, %v2341, 0.0
      %2390 = vadd.xlane.f32.xlu0 %v2389
      %v2391 = vpop.xlane.xlu0 %2390
      %v2392 = vsel %vm1332, %v2342, 0.0
      %2393 = vadd.xlane.f32.xlu0 %v2392
      %v2394 = vpop.xlane.xlu0 %2393
      %v2395 = vsel %vm1332, %v2343, 0.0
      %2396 = vadd.xlane.f32.xlu0 %v2395
      %v2397 = vpop.xlane.xlu0 %2396
      %v2398 = vsel %vm1332, %v2344, 0.0
      %2399 = vadd.xlane.f32.xlu0 %v2398
      %v2400 = vpop.xlane.xlu0 %2399
      %v2401 = vsel %vm1332, %v2345, 0.0
      %2402 = vadd.xlane.f32.xlu0 %v2401
      %v2403 = vpop.xlane.xlu0 %2402
      %v2404 = vsel %vm1332, %v2346, 0.0
      %2405 = vadd.xlane.f32.xlu0 %v2404
      %v2406 = vpop.xlane.xlu0 %2405
      %v2407 = vsel %vm1332, %v2347, 0.0
      %2408 = vadd.xlane.f32.xlu0 %v2407
      %v2409 = vpop.xlane.xlu0 %2408
      %v2410 = vsel %vm1332, %v2348, 0.0
      %2411 = vadd.xlane.f32.xlu0 %v2410
      %v2412 = vpop.xlane.xlu0 %2411
      %v2413 = vsel %vm1332, %v2349, 0.0
      %2414 = vadd.xlane.f32.xlu0 %v2413
      %v2415 = vpop.xlane.xlu0 %2414
      %v2416 = vsel %vm1332, %v2350, 0.0
      %2417 = vadd.xlane.f32.xlu0 %v2416
      %v2418 = vpop.xlane.xlu0 %2417
      %v2419 = vsel %vm1332, %v2351, 0.0
      %2420 = vadd.xlane.f32.xlu0 %v2419
      %v2421 = vpop.xlane.xlu0 %2420
      %v2422 = vsel %vm1332, %v2352, 0.0
      %2423 = vadd.xlane.f32.xlu0 %v2422
      %v2424 = vpop.xlane.xlu0 %2423
      %v2425 = vsel %vm1332, %v2353, 0.0
      %2426 = vadd.xlane.f32.xlu0 %v2425
      %v2427 = vpop.xlane.xlu0 %2426
      %v2428 = vsel %vm1332, %v2354, 0.0
      %2429 = vadd.xlane.f32.xlu0 %v2428
      %v2430 = vpop.xlane.xlu0 %2429
      %v2431 = vsel %vm1332, %v2355, 0.0
      %2432 = vadd.xlane.f32.xlu0 %v2431
      %v2433 = vpop.xlane.xlu0 %2432
      %v2434 = vsel %vm1332, %v2356, 0.0
      %2435 = vadd.xlane.f32.xlu0 %v2434
      %v2436 = vpop.xlane.xlu0 %2435
      %v2437 = vsel %vm1332, %v2357, 0.0
      %2438 = vadd.xlane.f32.xlu0 %v2437
      %v2439 = vpop.xlane.xlu0 %2438
      %v2440 = vsel %vm1332, %v2358, 0.0
      %2441 = vadd.xlane.f32.xlu0 %v2440
      %v2442 = vpop.xlane.xlu0 %2441
      %v2443 = vsel %vm1332, %v2359, 0.0
      %2444 = vadd.xlane.f32.xlu0 %v2443
      %v2445 = vpop.xlane.xlu0 %2444
      %v2446 = vsel %vm1332, %v2360, 0.0
      %2447 = vadd.xlane.f32.xlu0 %v2446
      %v2448 = vpop.xlane.xlu0 %2447
      %v2449 = vsel %vm1332, %v2361, 0.0
      %2450 = vadd.xlane.f32.xlu0 %v2449
      %v2451 = vpop.xlane.xlu0 %2450
      %v2452 = vsel %vm1332, %v2362, 0.0
      %2453 = vadd.xlane.f32.xlu0 %v2452
      %v2454 = vpop.xlane.xlu0 %2453
      %v2455 = vsel %vm1332, %v2363, 0.0
      %2456 = vadd.xlane.f32.xlu0 %v2455
      %v2457 = vpop.xlane.xlu0 %2456
      %v2458 = vsel %vm1332, %v2364, 0.0
      %2459 = vadd.xlane.f32.xlu0 %v2458
      %v2460 = vpop.xlane.xlu0 %2459
      %2493 = vrot.lane.b32.xlu0 %v2333, 96
      %v2494 = vpop.permute.xlu0 %2493
      %2495 = vrot.lane.b32.xlu0 %v2334, 96
      %v2496 = vpop.permute.xlu0 %2495
      %2497 = vrot.lane.b32.xlu0 %v2335, 96
      %v2498 = vpop.permute.xlu0 %2497
      %2499 = vrot.lane.b32.xlu0 %v2336, 96
      %v2500 = vpop.permute.xlu0 %2499
      %2501 = vrot.lane.b32.xlu0 %v2337, 96
      %v2502 = vpop.permute.xlu0 %2501
      %2503 = vrot.lane.b32.xlu0 %v2338, 96
      %v2504 = vpop.permute.xlu0 %2503
      %2505 = vrot.lane.b32.xlu0 %v2339, 96
      %v2506 = vpop.permute.xlu0 %2505
      %2507 = vrot.lane.b32.xlu0 %v2340, 96
      %v2508 = vpop.permute.xlu0 %2507
      %2509 = vrot.lane.b32.xlu0 %v2341, 96
      %v2510 = vpop.permute.xlu0 %2509
      %2511 = vrot.lane.b32.xlu0 %v2342, 96
      %v2512 = vpop.permute.xlu0 %2511
      %2513 = vrot.lane.b32.xlu0 %v2343, 96
      %v2514 = vpop.permute.xlu0 %2513
      %2515 = vrot.lane.b32.xlu0 %v2344, 96
      %v2516 = vpop.permute.xlu0 %2515
      %2517 = vrot.lane.b32.xlu0 %v2345, 96
      %v2518 = vpop.permute.xlu0 %2517
      %2519 = vrot.lane.b32.xlu0 %v2346, 96
      %v2520 = vpop.permute.xlu0 %2519
      %2521 = vrot.lane.b32.xlu0 %v2347, 96
      %v2522 = vpop.permute.xlu0 %2521
      %2523 = vrot.lane.b32.xlu0 %v2348, 96
      %v2524 = vpop.permute.xlu0 %2523
      %2525 = vrot.lane.b32.xlu0 %v2349, 96
      %v2526 = vpop.permute.xlu0 %2525
      %2527 = vrot.lane.b32.xlu0 %v2350, 96
      %v2528 = vpop.permute.xlu0 %2527
      %2529 = vrot.lane.b32.xlu0 %v2351, 96
      %v2530 = vpop.permute.xlu0 %2529
      %2531 = vrot.lane.b32.xlu0 %v2352, 96
      %v2532 = vpop.permute.xlu0 %2531
      %2533 = vrot.lane.b32.xlu0 %v2353, 96
      %v2534 = vpop.permute.xlu0 %2533
      %2535 = vrot.lane.b32.xlu0 %v2354, 96
      %v2536 = vpop.permute.xlu0 %2535
      %2537 = vrot.lane.b32.xlu0 %v2355, 96
      %v2538 = vpop.permute.xlu0 %2537
      %2539 = vrot.lane.b32.xlu0 %v2356, 96
      %v2540 = vpop.permute.xlu0 %2539
      %2541 = vrot.lane.b32.xlu0 %v2357, 96
      %v2542 = vpop.permute.xlu0 %2541
      %2543 = vrot.lane.b32.xlu0 %v2358, 96
      %v2544 = vpop.permute.xlu0 %2543
      %2545 = vrot.lane.b32.xlu0 %v2359, 96
      %v2546 = vpop.permute.xlu0 %2545
      %2547 = vrot.lane.b32.xlu0 %v2360, 96
      %v2548 = vpop.permute.xlu0 %2547
      %2549 = vrot.lane.b32.xlu0 %v2361, 96
      %v2550 = vpop.permute.xlu0 %2549
      %2551 = vrot.lane.b32.xlu0 %v2362, 96
      %v2552 = vpop.permute.xlu0 %2551
      %2553 = vrot.lane.b32.xlu0 %v2363, 96
      %v2554 = vpop.permute.xlu0 %2553
      %2555 = vrot.lane.b32.xlu0 %v2364, 96
      %v2556 = vpop.permute.xlu0 %2555
      %v2589 = vsel %vm1332, %v2494, 0.0
      %2590 = vadd.xlane.f32.xlu0 %v2589
      %v2591 = vpop.xlane.xlu0 %2590
      %v2592 = vsel %vm1332, %v2496, 0.0
      %2593 = vadd.xlane.f32.xlu0 %v2592
      %v2594 = vpop.xlane.xlu0 %2593
      %v2595 = vsel %vm1332, %v2498, 0.0
      %2596 = vadd.xlane.f32.xlu0 %v2595
      %v2597 = vpop.xlane.xlu0 %2596
      %v2598 = vsel %vm1332, %v2500, 0.0
      %2599 = vadd.xlane.f32.xlu0 %v2598
      %v2600 = vpop.xlane.xlu0 %2599
      %v2601 = vsel %vm1332, %v2502, 0.0
      %2602 = vadd.xlane.f32.xlu0 %v2601
      %v2603 = vpop.xlane.xlu0 %2602
      %v2604 = vsel %vm1332, %v2504, 0.0
      %2605 = vadd.xlane.f32.xlu0 %v2604
      %v2606 = vpop.xlane.xlu0 %2605
      %v2607 = vsel %vm1332, %v2506, 0.0
      %2608 = vadd.xlane.f32.xlu0 %v2607
      %v2609 = vpop.xlane.xlu0 %2608
      %v2610 = vsel %vm1332, %v2508, 0.0
      %2611 = vadd.xlane.f32.xlu0 %v2610
      %v2612 = vpop.xlane.xlu0 %2611
      %v2613 = vsel %vm1332, %v2510, 0.0
      %2614 = vadd.xlane.f32.xlu0 %v2613
      %v2615 = vpop.xlane.xlu0 %2614
      %v2616 = vsel %vm1332, %v2512, 0.0
      %2617 = vadd.xlane.f32.xlu0 %v2616
      %v2618 = vpop.xlane.xlu0 %2617
      %v2619 = vsel %vm1332, %v2514, 0.0
      %2620 = vadd.xlane.f32.xlu0 %v2619
      %v2621 = vpop.xlane.xlu0 %2620
      %v2622 = vsel %vm1332, %v2516, 0.0
      %2623 = vadd.xlane.f32.xlu0 %v2622
      %v2624 = vpop.xlane.xlu0 %2623
      %v2625 = vsel %vm1332, %v2518, 0.0
      %2626 = vadd.xlane.f32.xlu0 %v2625
      %v2627 = vpop.xlane.xlu0 %2626
      %v2628 = vsel %vm1332, %v2520, 0.0
      %2629 = vadd.xlane.f32.xlu0 %v2628
      %v2630 = vpop.xlane.xlu0 %2629
      %v2631 = vsel %vm1332, %v2522, 0.0
      %2632 = vadd.xlane.f32.xlu0 %v2631
      %v2633 = vpop.xlane.xlu0 %2632
      %v2634 = vsel %vm1332, %v2524, 0.0
      %2635 = vadd.xlane.f32.xlu0 %v2634
      %v2636 = vpop.xlane.xlu0 %2635
      %v2637 = vsel %vm1332, %v2526, 0.0
      %2638 = vadd.xlane.f32.xlu0 %v2637
      %v2639 = vpop.xlane.xlu0 %2638
      %v2640 = vsel %vm1332, %v2528, 0.0
      %2641 = vadd.xlane.f32.xlu0 %v2640
      %v2642 = vpop.xlane.xlu0 %2641
      %v2643 = vsel %vm1332, %v2530, 0.0
      %2644 = vadd.xlane.f32.xlu0 %v2643
      %v2645 = vpop.xlane.xlu0 %2644
      %v2646 = vsel %vm1332, %v2532, 0.0
      %2647 = vadd.xlane.f32.xlu0 %v2646
      %v2648 = vpop.xlane.xlu0 %2647
      %v2649 = vsel %vm1332, %v2534, 0.0
      %2650 = vadd.xlane.f32.xlu0 %v2649
      %v2651 = vpop.xlane.xlu0 %2650
      %v2652 = vsel %vm1332, %v2536, 0.0
      %2653 = vadd.xlane.f32.xlu0 %v2652
      %v2654 = vpop.xlane.xlu0 %2653
      %v2655 = vsel %vm1332, %v2538, 0.0
      %2656 = vadd.xlane.f32.xlu0 %v2655
      %v2657 = vpop.xlane.xlu0 %2656
      %v2658 = vsel %vm1332, %v2540, 0.0
      %2659 = vadd.xlane.f32.xlu0 %v2658
      %v2660 = vpop.xlane.xlu0 %2659
      %v2661 = vsel %vm1332, %v2542, 0.0
      %2662 = vadd.xlane.f32.xlu0 %v2661
      %v2663 = vpop.xlane.xlu0 %2662
      %v2664 = vsel %vm1332, %v2544, 0.0
      %2665 = vadd.xlane.f32.xlu0 %v2664
      %v2666 = vpop.xlane.xlu0 %2665
      %v2667 = vsel %vm1332, %v2546, 0.0
      %2668 = vadd.xlane.f32.xlu0 %v2667
      %v2669 = vpop.xlane.xlu0 %2668
      %v2670 = vsel %vm1332, %v2548, 0.0
      %2671 = vadd.xlane.f32.xlu0 %v2670
      %v2672 = vpop.xlane.xlu0 %2671
      %v2673 = vsel %vm1332, %v2550, 0.0
      %2674 = vadd.xlane.f32.xlu0 %v2673
      %v2675 = vpop.xlane.xlu0 %2674
      %v2676 = vsel %vm1332, %v2552, 0.0
      %2677 = vadd.xlane.f32.xlu0 %v2676
      %v2678 = vpop.xlane.xlu0 %2677
      %v2679 = vsel %vm1332, %v2554, 0.0
      %2680 = vadd.xlane.f32.xlu0 %v2679
      %v2681 = vpop.xlane.xlu0 %2680
      %v2682 = vsel %vm1332, %v2556, 0.0
      %2683 = vadd.xlane.f32.xlu0 %v2682
      %v2684 = vpop.xlane.xlu0 %2683
      %v2685 = vlaneseq
      %v2686 = vand.u32 %v2685, 127
      %vm2687 = vcmp.eq.s32.totalorder %v2686, 0
      %v2688 = vsel %vm2687, %v2367, %v2591
      %v2689 = vsel %vm2687, %v2370, %v2594
      %v2690 = vsel %vm2687, %v2373, %v2597
      %v2691 = vsel %vm2687, %v2376, %v2600
      %v2692 = vsel %vm2687, %v2379, %v2603
      %v2693 = vsel %vm2687, %v2382, %v2606
      %v2694 = vsel %vm2687, %v2385, %v2609
      %v2695 = vsel %vm2687, %v2388, %v2612
      %v2696 = vsel %vm2687, %v2391, %v2615
      %v2697 = vsel %vm2687, %v2394, %v2618
      %v2698 = vsel %vm2687, %v2397, %v2621
      %v2699 = vsel %vm2687, %v2400, %v2624
      %v2700 = vsel %vm2687, %v2403, %v2627
      %v2701 = vsel %vm2687, %v2406, %v2630
      %v2702 = vsel %vm2687, %v2409, %v2633
      %v2703 = vsel %vm2687, %v2412, %v2636
      %v2704 = vsel %vm2687, %v2415, %v2639
      %v2705 = vsel %vm2687, %v2418, %v2642
      %v2706 = vsel %vm2687, %v2421, %v2645
      %v2707 = vsel %vm2687, %v2424, %v2648
      %v2708 = vsel %vm2687, %v2427, %v2651
      %v2709 = vsel %vm2687, %v2430, %v2654
      %v2710 = vsel %vm2687, %v2433, %v2657
      %v2711 = vsel %vm2687, %v2436, %v2660
      %v2712 = vsel %vm2687, %v2439, %v2663
      %v2713 = vsel %vm2687, %v2442, %v2666
      %v2714 = vsel %vm2687, %v2445, %v2669
      %v2715 = vsel %vm2687, %v2448, %v2672
      %v2716 = vsel %vm2687, %v2451, %v2675
      %v2717 = vsel %vm2687, %v2454, %v2678
      %v2718 = vsel %vm2687, %v2457, %v2681
      %v2719 = vsel %vm2687, %v2460, %v2684
      %v2720 = vld [vmem:[%s12] sm:$0x1]
      %v2722 = vlaneseq
      %v2723 = vshrl.u32 %v2722, 7
      %v2724 = vsub.s32 0, %v2723
      %v2725 = vrot.slane %v2720, %v2724
      %v2727 = vadd.f32 %v2688, %v2725
      %v2728 = vadd.f32 %v2689, %v2725
      %v2729 = vadd.f32 %v2690, %v2725
      %v2730 = vadd.f32 %v2691, %v2725
      %v2731 = vadd.f32 %v2692, %v2725
      %v2732 = vadd.f32 %v2693, %v2725
      %v2733 = vadd.f32 %v2694, %v2725
      %v2734 = vadd.f32 %v2695, %v2725
      %v2735 = vadd.f32 %v2696, %v2725
      %v2736 = vadd.f32 %v2697, %v2725
      %v2737 = vadd.f32 %v2698, %v2725
      %v2738 = vadd.f32 %v2699, %v2725
      %v2739 = vadd.f32 %v2700, %v2725
      %v2740 = vadd.f32 %v2701, %v2725
      %v2741 = vadd.f32 %v2702, %v2725
      %v2742 = vadd.f32 %v2703, %v2725
      %v2743 = vadd.f32 %v2704, %v2725
      %v2744 = vadd.f32 %v2705, %v2725
      %v2745 = vadd.f32 %v2706, %v2725
      %v2746 = vadd.f32 %v2707, %v2725
      %v2747 = vadd.f32 %v2708, %v2725
      %v2748 = vadd.f32 %v2709, %v2725
      %v2749 = vadd.f32 %v2710, %v2725
      %v2750 = vadd.f32 %v2711, %v2725
      %v2751 = vadd.f32 %v2712, %v2725
      %v2752 = vadd.f32 %v2713, %v2725
      %v2753 = vadd.f32 %v2714, %v2725
      %v2754 = vadd.f32 %v2715, %v2725
      %v2755 = vadd.f32 %v2716, %v2725
      %v2756 = vadd.f32 %v2717, %v2725
      %v2757 = vadd.f32 %v2718, %v2725
      %v2758 = vadd.f32 %v2719, %v2725
      %v2759 = vsub.f32 0.0, %v2727
      %v2760 = vsub.f32 0.0, %v2728
      %v2761 = vsub.f32 0.0, %v2729
      %v2762 = vsub.f32 0.0, %v2730
      %v2763 = vsub.f32 0.0, %v2731
      %v2764 = vsub.f32 0.0, %v2732
      %v2765 = vsub.f32 0.0, %v2733
      %v2766 = vsub.f32 0.0, %v2734
      %v2767 = vsub.f32 0.0, %v2735
      %v2768 = vsub.f32 0.0, %v2736
      %v2769 = vsub.f32 0.0, %v2737
      %v2770 = vsub.f32 0.0, %v2738
      %v2771 = vsub.f32 0.0, %v2739
      %v2772 = vsub.f32 0.0, %v2740
      %v2773 = vsub.f32 0.0, %v2741
      %v2774 = vsub.f32 0.0, %v2742
      %v2775 = vsub.f32 0.0, %v2743
      %v2776 = vsub.f32 0.0, %v2744
      %v2777 = vsub.f32 0.0, %v2745
      %v2778 = vsub.f32 0.0, %v2746
      %v2779 = vsub.f32 0.0, %v2747
      %v2780 = vsub.f32 0.0, %v2748
      %v2781 = vsub.f32 0.0, %v2749
      %v2782 = vsub.f32 0.0, %v2750
      %v2783 = vsub.f32 0.0, %v2751
      %v2784 = vsub.f32 0.0, %v2752
      %v2785 = vsub.f32 0.0, %v2753
      %v2786 = vsub.f32 0.0, %v2754
      %v2787 = vsub.f32 0.0, %v2755
      %v2788 = vsub.f32 0.0, %v2756
      %v2789 = vsub.f32 0.0, %v2757
      %v2790 = vsub.f32 0.0, %v2758
      %v2791 = vmul.f32 %v2759, 1.442695
      %v2792 = vpow.pop %v2791
      %v2793 = vmul.f32 %v2760, 1.442695
      %v2794 = vpow.pop %v2793
      %v2795 = vmul.f32 %v2761, 1.442695
      %v2796 = vpow.pop %v2795
      %v2797 = vmul.f32 %v2762, 1.442695
      %v2798 = vpow.pop %v2797
      %v2799 = vmul.f32 %v2763, 1.442695
      %v2800 = vpow.pop %v2799
      %v2801 = vmul.f32 %v2764, 1.442695
      %v2802 = vpow.pop %v2801
      %v2803 = vmul.f32 %v2765, 1.442695
      %v2804 = vpow.pop %v2803
      %v2805 = vmul.f32 %v2766, 1.442695
      %v2806 = vpow.pop %v2805
      %v2807 = vmul.f32 %v2767, 1.442695
      %v2808 = vpow.pop %v2807
      %v2809 = vmul.f32 %v2768, 1.442695
      %v2810 = vpow.pop %v2809
      %v2811 = vmul.f32 %v2769, 1.442695
      %v2812 = vpow.pop %v2811
      %v2813 = vmul.f32 %v2770, 1.442695
      %v2814 = vpow.pop %v2813
      %v2815 = vmul.f32 %v2771, 1.442695
      %v2816 = vpow.pop %v2815
      %v2817 = vmul.f32 %v2772, 1.442695
      %v2818 = vpow.pop %v2817
      %v2819 = vmul.f32 %v2773, 1.442695
      %v2820 = vpow.pop %v2819
      %v2821 = vmul.f32 %v2774, 1.442695
      %v2822 = vpow.pop %v2821
      %v2823 = vmul.f32 %v2775, 1.442695
      %v2824 = vpow.pop %v2823
      %v2825 = vmul.f32 %v2776, 1.442695
      %v2826 = vpow.pop %v2825
      %v2827 = vmul.f32 %v2777, 1.442695
      %v2828 = vpow.pop %v2827
      %v2829 = vmul.f32 %v2778, 1.442695
      %v2830 = vpow.pop %v2829
      %v2831 = vmul.f32 %v2779, 1.442695
      %v2832 = vpow.pop %v2831
      %v2833 = vmul.f32 %v2780, 1.442695
      %v2834 = vpow.pop %v2833
      %v2835 = vmul.f32 %v2781, 1.442695
      %v2836 = vpow.pop %v2835
      %v2837 = vmul.f32 %v2782, 1.442695
      %v2838 = vpow.pop %v2837
      %v2839 = vmul.f32 %v2783, 1.442695
      %v2840 = vpow.pop %v2839
      %v2841 = vmul.f32 %v2784, 1.442695
      %v2842 = vpow.pop %v2841
      %v2843 = vmul.f32 %v2785, 1.442695
      %v2844 = vpow.pop %v2843
      %v2845 = vmul.f32 %v2786, 1.442695
      %v2846 = vpow.pop %v2845
      %v2847 = vmul.f32 %v2787, 1.442695
      %v2848 = vpow.pop %v2847
      %v2849 = vmul.f32 %v2788, 1.442695
      %v2850 = vpow.pop %v2849
      %v2851 = vmul.f32 %v2789, 1.442695
      %v2852 = vpow.pop %v2851
      %v2853 = vmul.f32 %v2790, 1.442695
      %v2854 = vpow.pop %v2853
      %v2855 = vadd.f32 %v2792, 1.0
      %v2856 = vadd.f32 %v2794, 1.0
      %v2857 = vadd.f32 %v2796, 1.0
      %v2858 = vadd.f32 %v2798, 1.0
      %v2859 = vadd.f32 %v2800, 1.0
      %v2860 = vadd.f32 %v2802, 1.0
      %v2861 = vadd.f32 %v2804, 1.0
      %v2862 = vadd.f32 %v2806, 1.0
      %v2863 = vadd.f32 %v2808, 1.0
      %v2864 = vadd.f32 %v2810, 1.0
      %v2865 = vadd.f32 %v2812, 1.0
      %v2866 = vadd.f32 %v2814, 1.0
      %v2867 = vadd.f32 %v2816, 1.0
      %v2868 = vadd.f32 %v2818, 1.0
      %v2869 = vadd.f32 %v2820, 1.0
      %v2870 = vadd.f32 %v2822, 1.0
      %v2871 = vadd.f32 %v2824, 1.0
      %v2872 = vadd.f32 %v2826, 1.0
      %v2873 = vadd.f32 %v2828, 1.0
      %v2874 = vadd.f32 %v2830, 1.0
      %v2875 = vadd.f32 %v2832, 1.0
      %v2876 = vadd.f32 %v2834, 1.0
      %v2877 = vadd.f32 %v2836, 1.0
      %v2878 = vadd.f32 %v2838, 1.0
      %v2879 = vadd.f32 %v2840, 1.0
      %v2880 = vadd.f32 %v2842, 1.0
      %v2881 = vadd.f32 %v2844, 1.0
      %v2882 = vadd.f32 %v2846, 1.0
      %v2883 = vadd.f32 %v2848, 1.0
      %v2884 = vadd.f32 %v2850, 1.0
      %v2885 = vadd.f32 %v2852, 1.0
      %v2886 = vadd.f32 %v2854, 1.0
      %v2887 = vrcp.pop %v2855
      %v2888 = vrcp.pop %v2856
      %v2889 = vrcp.pop %v2857
      %v2890 = vrcp.pop %v2858
      %v2891 = vrcp.pop %v2859
      %v2892 = vrcp.pop %v2860
      %v2893 = vrcp.pop %v2861
      %v2894 = vrcp.pop %v2862
      %v2895 = vrcp.pop %v2863
      %v2896 = vrcp.pop %v2864
      %v2897 = vrcp.pop %v2865
      %v2898 = vrcp.pop %v2866
      %v2899 = vrcp.pop %v2867
      %v2900 = vrcp.pop %v2868
      %v2901 = vrcp.pop %v2869
      %v2902 = vrcp.pop %v2870
      %v2903 = vrcp.pop %v2871
      %v2904 = vrcp.pop %v2872
      %v2905 = vrcp.pop %v2873
      %v2906 = vrcp.pop %v2874
      %v2907 = vrcp.pop %v2875
      %v2908 = vrcp.pop %v2876
      %v2909 = vrcp.pop %v2877
      %v2910 = vrcp.pop %v2878
      %v2911 = vrcp.pop %v2879
      %v2912 = vrcp.pop %v2880
      %v2913 = vrcp.pop %v2881
      %v2914 = vrcp.pop %v2882
      %v2915 = vrcp.pop %v2883
      %v2916 = vrcp.pop %v2884
      %v2917 = vrcp.pop %v2885
      %v2918 = vrcp.pop %v2886
      %vm2919 = vcmask 15360
      %2920 = vst.msk [vmem:[%s464] sm:$0xff] %vm2919, %v2887
      %2921 = vst.msk [vmem:[%s464 + $0x8] sm:$0xff] %vm2919, %v2888
      %2922 = vst.msk [vmem:[%s464 + $0x10] sm:$0xff] %vm2919, %v2889
      %2923 = vst.msk [vmem:[%s464 + $0x18] sm:$0xff] %vm2919, %v2890
      %2924 = vst.msk [vmem:[%s464 + $0x20] sm:$0xff] %vm2919, %v2891
      %2925 = vst.msk [vmem:[%s464 + $0x28] sm:$0xff] %vm2919, %v2892
      %2926 = vst.msk [vmem:[%s464 + $0x30] sm:$0xff] %vm2919, %v2893
      %2927 = vst.msk [vmem:[%s464 + $0x38] sm:$0xff] %vm2919, %v2894
      %2928 = vst.msk [vmem:[%s464 + $0x40] sm:$0xff] %vm2919, %v2895
      %2929 = vst.msk [vmem:[%s464 + $0x48] sm:$0xff] %vm2919, %v2896
      %2930 = vst.msk [vmem:[%s464 + $0x50] sm:$0xff] %vm2919, %v2897
      %2931 = vst.msk [vmem:[%s464 + $0x58] sm:$0xff] %vm2919, %v2898
      %2932 = vst.msk [vmem:[%s464 + $0x60] sm:$0xff] %vm2919, %v2899
      %2933 = vst.msk [vmem:[%s464 + $0x68] sm:$0xff] %vm2919, %v2900
      %2934 = vst.msk [vmem:[%s464 + $0x70] sm:$0xff] %vm2919, %v2901
      %2935 = vst.msk [vmem:[%s464 + $0x78] sm:$0xff] %vm2919, %v2902
      %2936 = vst.msk [vmem:[%s464 + $0x80] sm:$0xff] %vm2919, %v2903
      %2937 = vst.msk [vmem:[%s464 + $0x88] sm:$0xff] %vm2919, %v2904
      %2938 = vst.msk [vmem:[%s464 + $0x90] sm:$0xff] %vm2919, %v2905
      %2939 = vst.msk [vmem:[%s464 + $0x98] sm:$0xff] %vm2919, %v2906
      %2940 = vst.msk [vmem:[%s464 + $0xa0] sm:$0xff] %vm2919, %v2907
      %2941 = vst.msk [vmem:[%s464 + $0xa8] sm:$0xff] %vm2919, %v2908
      %2942 = vst.msk [vmem:[%s464 + $0xb0] sm:$0xff] %vm2919, %v2909
      %2943 = vst.msk [vmem:[%s464 + $0xb8] sm:$0xff] %vm2919, %v2910
      %2944 = vst.msk [vmem:[%s464 + $0xc0] sm:$0xff] %vm2919, %v2911
      %2945 = vst.msk [vmem:[%s464 + $0xc8] sm:$0xff] %vm2919, %v2912
      %2946 = vst.msk [vmem:[%s464 + $0xd0] sm:$0xff] %vm2919, %v2913
      %2947 = vst.msk [vmem:[%s464 + $0xd8] sm:$0xff] %vm2919, %v2914
      %2948 = vst.msk [vmem:[%s464 + $0xe0] sm:$0xff] %vm2919, %v2915
      %2949 = vst.msk [vmem:[%s464 + $0xe8] sm:$0xff] %vm2919, %v2916
      %2950 = vst.msk [vmem:[%s464 + $0xf0] sm:$0xff] %vm2919, %v2917
      %2951 = vst.msk [vmem:[%s464 + $0xf8] sm:$0xff] %vm2919, %v2918
      %s2952 = smul.u32 32, %s24
      %p2953 = scmp.lt.s32.totalorder %s2952, 127
      %s2954 = scalar_select %p2953, %s2952, 127
      %s2955 = smul.addr %s2954, 8
      %s2956 = scalar_lea.vmem %s13, %s2955
      // Predicated region
      $region73: #{tpu_custom_call.1} parent=71 // pred_check
        %p2957 = pneg %p325
      $region74: #{tpu_custom_call.1} parent=71 // pred_check_branch
        %2959 = sbr.rel (%p2957) target = $region76
      $region75: #{tpu_custom_call.1} parent=71 // pred_region
        %s2960 = smul.u32 32, %s24
      $region76: #{tpu_custom_call.1} parent=71 // pred_fallthru
        _
    $region72: #{tpu_custom_call.1} parent=5 // pred_fallthru
      _
    %p2961 = scmp.le.s32.totalorder 2, %s19
    // Predicated region
    $region77: #{tpu_custom_call.1} parent=5 // pred_check
      %p2962 = pneg %p2961
    $region78: #{tpu_custom_call.1} parent=5 // pred_check_branch
      %2964 = sbr.rel (%p2962) target = $region80
    $region79: #{tpu_custom_call.1} parent=5 // pred_region
      %s2965 = ssub.s32 %s19, 2
      // Predicated region
      $region81: #{tpu_custom_call.1} parent=79 // pred_check
        %p2966 = pneg %p331
      $region82: #{tpu_custom_call.1} parent=79 // pred_check_branch
        %2968 = sbr.rel (%p2966) target = $region84
      $region83: #{tpu_custom_call.1} parent=79 // pred_region
        %s2969 = smul.u32 32, %s25
        %p2970 = scmp.lt.s32.totalorder %s2969, 127
        %s2971 = scalar_select %p2970, %s2969, 127
        %s2972 = smul.addr %s2971, 8
        %s2973 = scalar_lea.vmem %s13, %s2972
      $region84: #{tpu_custom_call.1} parent=79 // pred_fallthru
        _
    $region80: #{tpu_custom_call.1} parent=5 // pred_fallthru
      _
  $region6: #{tpu_custom_call.1} parent=0 // loop_footer
    %s23 = sadd.s32 1, %s19
  $region7: #{tpu_custom_call.1} parent=0 // loop_footer_branch
    %18 = sbr.rel target = $region3
  $region8: #{tpu_custom_call.1} parent=0 // loop_exit
    _

</llo_original>
